<compile_context>
chip_gen: v6e
topology: v6e:2x2x1
jax: 0.10.0
libtpu: 0.0.40
codegen_flags: <defaults>
</compile_context>

<pallas_src>
import functools

import jax
import jax.numpy as jnp
from jax import lax
from jax.experimental import pallas as pl
from jax.experimental.pallas import tpu as pltpu


def _use_bf16_exp():
    """bf16 EUP exp only on v6e/v7x; v5e and older have no bf16 VPU/EUP."""
    try:
        kind = jax.devices()[0].device_kind.lower()
    except Exception:
        return False
    return ("v6" in kind) or ("v7" in kind) or ("7x" in kind)


# ----------------------------------------------------------------------------
# Fused kernel: QKV projection + softmax attention + gamma * out + x residual
# ----------------------------------------------------------------------------
def _fused_attn_kernel(gamma_ref, x_ref, wq_ref, wk_ref, wv_ref,
                       bq_ref, bk_ref, bv_ref, o_ref,
                       k_sc, v_sc, *, tn, use_bf16_exp):
    ni = pl.program_id(1)

    # Once per batch: project the whole (C, N) feature map to K (cq, N) and
    # V (C, N) in bf16 VMEM scratch (reused by every q tile of this batch).
    @pl.when(ni == 0)
    def _project_kv():
        xb = x_ref[0].astype(jnp.bfloat16)                              # (C, N)
        k = jnp.dot(wk_ref[...], xb,
                    preferred_element_type=jnp.float32) + bk_ref[...]   # (cq, N)
        v = jnp.dot(wv_ref[...], xb,
                    preferred_element_type=jnp.float32) + bv_ref[...]   # (C, N)
        k_sc[...] = k.astype(jnp.bfloat16)
        v_sc[...] = v.astype(jnp.bfloat16)

    # Current q tile of the spatial axis (columns of the channels-first map).
    col = pl.multiple_of(ni * tn, tn)
    xt_f32 = x_ref[0, :, pl.ds(col, tn)]                                # (C, tn) f32
    xt = xt_f32.astype(jnp.bfloat16)

    q = (jnp.dot(wq_ref[...], xt,
                 preferred_element_type=jnp.float32) + bq_ref[...]
         ).astype(jnp.bfloat16)                                         # (cq, tn)

    # energy^T: e_t[j, i] = k_j . q_i  (contract the channel axis directly,
    # no transposes; softmax runs along the sublane/key axis so the
    # normalizer comes out as a (1, tn) row that broadcasts over the output).
    e_t = lax.dot_general(k_sc[...], q,
                          dimension_numbers=(((0,), (0,)), ((), ())),
                          preferred_element_type=jnp.float32)           # (N, tn)
    m = jnp.max(e_t, axis=0, keepdims=True)                             # (1, tn)
    if use_bf16_exp:
        p_t = jnp.exp((e_t - m).astype(jnp.bfloat16))                   # bf16 EUP
        l = jnp.sum(p_t.astype(jnp.float32), axis=0, keepdims=True)     # f32 sum
    else:
        p_f32 = jnp.exp(e_t - m)
        l = jnp.sum(p_f32, axis=0, keepdims=True)
        p_t = p_f32.astype(jnp.bfloat16)

    attn = jnp.dot(v_sc[...], p_t,
                   preferred_element_type=jnp.float32)                  # (C, tn)
    scale = gamma_ref[0] * pl.reciprocal(l, approx=True)                # (1, tn)
    o_ref[0] = (attn * scale + xt_f32).astype(o_ref.dtype)


def _fused_self_attention(x_nc, wq2, wk2, wv2, bq2, bk2, bv2, gamma1, *, tn):
    """x_nc: (B, C, N) f32, weights bf16 (out, in), biases f32 (out, 1)."""
    B, C, N = x_nc.shape
    cq = wq2.shape[0]
    kern = functools.partial(_fused_attn_kernel, tn=tn,
                             use_bf16_exp=_use_bf16_exp())
    return pl.pallas_call(
        kern,
        out_shape=jax.ShapeDtypeStruct((B, C, N), jnp.float32),
        grid=(B, N // tn),
        in_specs=[
            pl.BlockSpec(memory_space=pltpu.MemorySpace.SMEM),           # gamma
            pl.BlockSpec((1, C, N), lambda b, ni: (b, 0, 0)),            # x (per-batch)
            pl.BlockSpec((cq, C), lambda b, ni: (0, 0)),                 # Wq (resident)
            pl.BlockSpec((cq, C), lambda b, ni: (0, 0)),                 # Wk
            pl.BlockSpec((C, C), lambda b, ni: (0, 0)),                  # Wv
            pl.BlockSpec((cq, 1), lambda b, ni: (0, 0)),                 # bq
            pl.BlockSpec((cq, 1), lambda b, ni: (0, 0)),                 # bk
            pl.BlockSpec((C, 1), lambda b, ni: (0, 0)),                  # bv
        ],
        out_specs=pl.BlockSpec((1, C, tn), lambda b, ni: (b, 0, ni)),
        scratch_shapes=[
            pltpu.VMEM((cq, N), jnp.bfloat16),   # K  (whole sequence, per batch)
            pltpu.VMEM((C, N), jnp.bfloat16),    # V
        ],
        compiler_params=pltpu.CompilerParams(
            dimension_semantics=("parallel", "arbitrary")),
    )(gamma1, x_nc, wq2, wk2, wv2, bq2, bk2, bv2)


# ----------------------------------------------------------------------------
# Module wrapper (matches PyTorch SelfAttention.forward, with_attn=False)
# ----------------------------------------------------------------------------
def self_attention(x, params, *, tn=256):
    """x: (B, C, H, W) f32. params = (wq, bq, wk, bk, wv, bv, gamma) with
    Conv2d-shaped weights (Cout, Cin, 1, 1)."""
    wq, bq, wk, bk, wv, bv, gamma = params
    B, C, H, W = x.shape
    N = H * W
    cq = wq.shape[0]

    tn = min(tn, N)
    assert N % tn == 0, f"N={N} must be divisible by q tile {tn}"

    x_nc = x.reshape(B, C, N)                       # channels-first; no transpose
    wq2 = wq.reshape(cq, C).astype(jnp.bfloat16)
    wk2 = wk.reshape(cq, C).astype(jnp.bfloat16)
    wv2 = wv.reshape(C, C).astype(jnp.bfloat16)
    bq2 = bq.reshape(cq, 1).astype(jnp.float32)
    bk2 = bk.reshape(cq, 1).astype(jnp.float32)
    bv2 = bv.reshape(C, 1).astype(jnp.float32)
    gamma1 = gamma.reshape(1).astype(jnp.float32)

    out_nc = _fused_self_attention(x_nc, wq2, wk2, wv2, bq2, bk2, bv2,
                                   gamma1, tn=tn)
    return out_nc.reshape(B, C, H, W)               # free reshape; no transpose


# ----------------------------------------------------------------------------
# Pure-JAX reference (same bf16 rounding of matmul operands as the kernel)
# ----------------------------------------------------------------------------
def _reference_self_attention(x, params):
    wq, bq, wk, bk, wv, bv, gamma = params
    B, C, H, W = x.shape
    N = H * W
    cq = wq.shape[0]
    xc = x.reshape(B, C, N)
    xb = xc.astype(jnp.bfloat16).astype(jnp.float32)
    wq_m = wq.reshape(cq, C).astype(jnp.bfloat16).astype(jnp.float32)
    wk_m = wk.reshape(cq, C).astype(jnp.bfloat16).astype(jnp.float32)
    wv_m = wv.reshape(C, C).astype(jnp.bfloat16).astype(jnp.float32)
    q = jnp.einsum("oc,bcn->bon", wq_m, xb) + bq.reshape(1, cq, 1)
    k = jnp.einsum("oc,bcn->bon", wk_m, xb) + bk.reshape(1, cq, 1)
    v = jnp.einsum("oc,bcn->bon", wv_m, xb) + bv.reshape(1, C, 1)
    q = q.astype(jnp.bfloat16).astype(jnp.float32)
    k = k.astype(jnp.bfloat16).astype(jnp.float32)
    v = v.astype(jnp.bfloat16).astype(jnp.float32)
    energy = jnp.einsum("bci,bcj->bij", q, k)          # (B, N, N)
    attn = jax.nn.softmax(energy, axis=-1)
    o = jnp.einsum("bcj,bij->bci", v, attn)            # (B, C, N)
    out = gamma[0] * o + xc
    return out.reshape(B, C, H, W)


if __name__ == "__main__":
    key = jax.random.PRNGKey(0)
    in_dim = 128                      # module default
    B, H, W = 2, 16, 16               # small spatial -> N = 256
    cq = in_dim // 8

    k1, k2, k3, k4, k5, k6, kx = jax.random.split(key, 7)
    wq = jax.random.normal(k1, (cq, in_dim, 1, 1), jnp.float32) / jnp.sqrt(in_dim)
    bq = 0.1 * jax.random.normal(k2, (cq,), jnp.float32)
    wk = jax.random.normal(k3, (cq, in_dim, 1, 1), jnp.float32) / jnp.sqrt(in_dim)
    bk = 0.1 * jax.random.normal(k4, (cq,), jnp.float32)
    wv = jax.random.normal(k5, (in_dim, in_dim, 1, 1), jnp.float32) / jnp.sqrt(in_dim)
    bv = 0.1 * jax.random.normal(k6, (in_dim,), jnp.float32)
    gamma = jnp.array([0.5], jnp.float32)   # nonzero to exercise the attention path

    x = jax.random.normal(kx, (B, in_dim, H, W), jnp.float32)
    params = (wq, bq, wk, bk, wv, bv, gamma)

    out = jax.jit(self_attention)(x, params)
    out = jax.block_until_ready(out)

    assert out.shape == (B, in_dim, H, W)
    assert bool(jnp.all(jnp.isfinite(out)))

    ref = _reference_self_attention(x, params)
    max_diff = float(jnp.max(jnp.abs(out - ref)))
    assert max_diff < 5e-2, f"max abs diff vs reference too large: {max_diff}"

    print("KERNEL_OK")
</pallas_src>

<mosaic_0001>
module attributes {stable_mosaic.version = 11 : i64} {
  func.func @_fused_attn_kernel(%arg0: i32, %arg1: i32, %arg2: memref<1xf32, #tpu.memory_space<smem>>, %arg3: memref<1x128x256xf32, #tpu.memory_space<vmem>>, %arg4: memref<16x128xbf16, #tpu.memory_space<vmem>>, %arg5: memref<16x128xbf16, #tpu.memory_space<vmem>>, %arg6: memref<128x128xbf16, #tpu.memory_space<vmem>>, %arg7: memref<16x1xf32, #tpu.memory_space<vmem>>, %arg8: memref<16x1xf32, #tpu.memory_space<vmem>>, %arg9: memref<128x1xf32, #tpu.memory_space<vmem>>, %arg10: memref<1x128x256xf32, #tpu.memory_space<vmem>>, %arg11: memref<16x256xbf16, #tpu.memory_space<vmem>>, %arg12: memref<128x256xbf16, #tpu.memory_space<vmem>>) attributes {dimension_semantics = [#tpu.dimension_semantics<parallel>, #tpu.dimension_semantics<arbitrary>], iteration_bounds = array<i64: 2, 1>, scalar_prefetch = 0 : i64, scratch_operands = 2 : i64, tpu.core_type = #tpu.core_type<tc>, window_params = [{transform_indices = @transform_0, window_bounds = array<i64: 1>}, {transform_indices = @transform_1, window_bounds = array<i64: 1, 128, 256>}, {pipeline_mode = #tpu.pipeline_mode<synchronous>, transform_indices = @transform_2, window_bounds = array<i64: 16, 128>}, {pipeline_mode = #tpu.pipeline_mode<synchronous>, transform_indices = @transform_3, window_bounds = array<i64: 16, 128>}, {pipeline_mode = #tpu.pipeline_mode<synchronous>, transform_indices = @transform_4, window_bounds = array<i64: 128, 128>}, {pipeline_mode = #tpu.pipeline_mode<synchronous>, transform_indices = @transform_5, window_bounds = array<i64: 16, 1>}, {pipeline_mode = #tpu.pipeline_mode<synchronous>, transform_indices = @transform_6, window_bounds = array<i64: 16, 1>}, {pipeline_mode = #tpu.pipeline_mode<synchronous>, transform_indices = @transform_7, window_bounds = array<i64: 128, 1>}, {transform_indices = @transform_8, window_bounds = array<i64: 1, 128, 256>}]} {
    %c0_i32 = arith.constant 0 : i32
    %0 = arith.cmpi eq, %arg1, %c0_i32 : i32
    %1 = arith.extui %0 : i1 to i32
    %c0_i32_0 = arith.constant 0 : i32
    %2 = arith.cmpi ne, %1, %c0_i32_0 : i32
    scf.if %2 {
      %c0_18 = arith.constant 0 : index
      %c0_19 = arith.constant 0 : index
      %c0_20 = arith.constant 0 : index
      %37 = vector.load %arg3[%c0_18, %c0_19, %c0_20] : memref<1x128x256xf32, #tpu.memory_space<vmem>>, vector<1x128x256xf32>
      %38 = vector.shape_cast %37 : vector<1x128x256xf32> to vector<128x256xf32>
      %39 = arith.truncf %38 : vector<128x256xf32> to vector<128x256xbf16>
      %c0_21 = arith.constant 0 : index
      %c0_22 = arith.constant 0 : index
      %40 = vector.load %arg5[%c0_21, %c0_22] : memref<16x128xbf16, #tpu.memory_space<vmem>>, vector<16x128xbf16>
      %cst_23 = arith.constant dense<0.000000e+00> : vector<16x256xf32>
      %41 = tpu.matmul %40, %39, %cst_23 {dimension_numbers = #tpu.dot_dimension_numbers<[1], [0], [0], [1], [0, 0, 1, 1], [], []>} : vector<16x128xbf16>, vector<128x256xbf16>, vector<16x256xf32> -> vector<16x256xf32>
      %c0_24 = arith.constant 0 : index
      %c0_25 = arith.constant 0 : index
      %42 = vector.load %arg8[%c0_24, %c0_25] : memref<16x1xf32, #tpu.memory_space<vmem>>, vector<16x1xf32>
      %43 = vector.broadcast %42 : vector<16x1xf32> to vector<16x256xf32>
      %44 = arith.addf %41, %43 : vector<16x256xf32>
      %c0_26 = arith.constant 0 : index
      %c0_27 = arith.constant 0 : index
      %45 = vector.load %arg6[%c0_26, %c0_27] : memref<128x128xbf16, #tpu.memory_space<vmem>>, vector<128x128xbf16>
      %cst_28 = arith.constant dense<0.000000e+00> : vector<128x256xf32>
      %46 = tpu.matmul %45, %39, %cst_28 {dimension_numbers = #tpu.dot_dimension_numbers<[1], [0], [0], [1], [0, 0, 1, 1], [], []>} : vector<128x128xbf16>, vector<128x256xbf16>, vector<128x256xf32> -> vector<128x256xf32>
      %c0_29 = arith.constant 0 : index
      %c0_30 = arith.constant 0 : index
      %47 = vector.load %arg9[%c0_29, %c0_30] : memref<128x1xf32, #tpu.memory_space<vmem>>, vector<128x1xf32>
      %48 = vector.broadcast %47 : vector<128x1xf32> to vector<128x256xf32>
      %49 = arith.addf %46, %48 : vector<128x256xf32>
      %50 = arith.truncf %44 : vector<16x256xf32> to vector<16x256xbf16>
      %c0_31 = arith.constant 0 : index
      %c0_32 = arith.constant 0 : index
      %51 = vector.load %arg11[%c0_31, %c0_32] : memref<16x256xbf16, #tpu.memory_space<vmem>>, vector<16x256xbf16>
      tpu.vector_store %arg11[%c0_31, %c0_32], %50 {strides = array<i32>} : memref<16x256xbf16, #tpu.memory_space<vmem>>, vector<16x256xbf16>,
      %52 = arith.truncf %49 : vector<128x256xf32> to vector<128x256xbf16>
      %c0_33 = arith.constant 0 : index
      %c0_34 = arith.constant 0 : index
      %53 = vector.load %arg12[%c0_33, %c0_34] : memref<128x256xbf16, #tpu.memory_space<vmem>>, vector<128x256xbf16>
      tpu.vector_store %arg12[%c0_33, %c0_34], %52 {strides = array<i32>} : memref<128x256xbf16, #tpu.memory_space<vmem>>, vector<128x256xbf16>,
    } else {
    }
    %c256_i32 = arith.constant 256 : i32
    %3 = arith.muli %arg1, %c256_i32 : i32
    %4 = tpu.assume_multiple %3, 256 : i32
    %c0 = arith.constant 0 : index
    %c0_1 = arith.constant 0 : index
    %5 = arith.index_cast %4 : i32 to index
    %6 = vector.load %arg3[%c0, %c0_1, %5] : memref<1x128x256xf32, #tpu.memory_space<vmem>>, vector<1x128x256xf32>
    %7 = vector.shape_cast %6 : vector<1x128x256xf32> to vector<128x256xf32>
    %8 = arith.truncf %7 : vector<128x256xf32> to vector<128x256xbf16>
    %c0_2 = arith.constant 0 : index
    %c0_3 = arith.constant 0 : index
    %9 = vector.load %arg4[%c0_2, %c0_3] : memref<16x128xbf16, #tpu.memory_space<vmem>>, vector<16x128xbf16>
    %cst = arith.constant dense<0.000000e+00> : vector<16x256xf32>
    %10 = tpu.matmul %9, %8, %cst {dimension_numbers = #tpu.dot_dimension_numbers<[1], [0], [0], [1], [0, 0, 1, 1], [], []>} : vector<16x128xbf16>, vector<128x256xbf16>, vector<16x256xf32> -> vector<16x256xf32>
    %c0_4 = arith.constant 0 : index
    %c0_5 = arith.constant 0 : index
    %11 = vector.load %arg7[%c0_4, %c0_5] : memref<16x1xf32, #tpu.memory_space<vmem>>, vector<16x1xf32>
    %12 = vector.broadcast %11 : vector<16x1xf32> to vector<16x256xf32>
    %13 = arith.addf %10, %12 : vector<16x256xf32>
    %14 = arith.truncf %13 : vector<16x256xf32> to vector<16x256xbf16>
    %c0_6 = arith.constant 0 : index
    %c0_7 = arith.constant 0 : index
    %15 = vector.load %arg11[%c0_6, %c0_7] : memref<16x256xbf16, #tpu.memory_space<vmem>>, vector<16x256xbf16>
    %cst_8 = arith.constant dense<0.000000e+00> : vector<256x256xf32>
    %16 = tpu.matmul %15, %14, %cst_8 {dimension_numbers = #tpu.dot_dimension_numbers<[0], [0], [1], [1], [0, 1, 1, 1], [], []>} : vector<16x256xbf16>, vector<16x256xbf16>, vector<256x256xf32> -> vector<256x256xf32>
    %cst_9 = arith.constant dense<0xFF800000> : vector<256xf32>
    %17 = vector.multi_reduction <maximumf>, %16, %cst_9 [0] : vector<256x256xf32> to vector<256xf32>
    %18 = vector.shape_cast %17 : vector<256xf32> to vector<1x256xf32>
    %19 = vector.broadcast %18 : vector<1x256xf32> to vector<256x256xf32>
    %20 = arith.subf %16, %19 : vector<256x256xf32>
    %21 = math.exp %20 : vector<256x256xf32>
    %cst_10 = arith.constant dense<0.000000e+00> : vector<256xf32>
    %22 = vector.multi_reduction <add>, %21, %cst_10 [0] : vector<256x256xf32> to vector<256xf32>
    %23 = vector.shape_cast %22 : vector<256xf32> to vector<1x256xf32>
    %24 = arith.truncf %21 : vector<256x256xf32> to vector<256x256xbf16>
    %c0_11 = arith.constant 0 : index
    %c0_12 = arith.constant 0 : index
    %25 = vector.load %arg12[%c0_11, %c0_12] : memref<128x256xbf16, #tpu.memory_space<vmem>>, vector<128x256xbf16>
    %cst_13 = arith.constant dense<0.000000e+00> : vector<128x256xf32>
    %26 = tpu.matmul %25, %24, %cst_13 {dimension_numbers = #tpu.dot_dimension_numbers<[1], [0], [0], [1], [0, 0, 1, 1], [], []>} : vector<128x256xbf16>, vector<256x256xbf16>, vector<128x256xf32> -> vector<128x256xf32>
    %c0_14 = arith.constant 0 : index
    %27 = memref.load %arg2[%c0_14] : memref<1xf32, #tpu.memory_space<smem>>
    %28 = tpu.reciprocal %23 {approx = true} : vector<1x256xf32> -> vector<1x256xf32>
    %29 = vector.broadcast %27 : f32 to vector<1x256xf32>
    %30 = arith.mulf %29, %28 : vector<1x256xf32>
    %31 = vector.broadcast %30 : vector<1x256xf32> to vector<128x256xf32>
    %32 = arith.mulf %26, %31 : vector<128x256xf32>
    %33 = arith.addf %32, %7 : vector<128x256xf32>
    %c0_15 = arith.constant 0 : index
    %c0_16 = arith.constant 0 : index
    %c0_17 = arith.constant 0 : index
    %34 = vector.load %arg10[%c0_15, %c0_16, %c0_17] : memref<1x128x256xf32, #tpu.memory_space<vmem>>, vector<1x128x256xf32>
    %35 = vector.shape_cast %34 : vector<1x128x256xf32> to vector<128x256xf32>
    %36 = vector.shape_cast %33 : vector<128x256xf32> to vector<1x128x256xf32>
    tpu.vector_store %arg10[%c0_15, %c0_16, %c0_17], %36 {strides = array<i32>} : memref<1x128x256xf32, #tpu.memory_space<vmem>>, vector<1x128x256xf32>,
    return
  }
  func.func @transform_0(%arg0: i32, %arg1: i32) -> i32 {
    %c0_i32 = arith.constant 0 : i32
    %c0_i32_0 = arith.constant 0 : i32
    return %c0_i32 : i32
  }
  func.func @transform_1(%arg0: i32, %arg1: i32) -> (i32, i32, i32) {
    %c0_i32 = arith.constant 0 : i32
    %c0_i32_0 = arith.constant 0 : i32
    %c0_i32_1 = arith.constant 0 : i32
    return %arg0, %c0_i32, %c0_i32_0 : i32, i32, i32
  }
  func.func @transform_2(%arg0: i32, %arg1: i32) -> (i32, i32) {
    %c0_i32 = arith.constant 0 : i32
    %c0_i32_0 = arith.constant 0 : i32
    %c0_i32_1 = arith.constant 0 : i32
    return %c0_i32, %c0_i32_0 : i32, i32
  }
  func.func @transform_3(%arg0: i32, %arg1: i32) -> (i32, i32) {
    %c0_i32 = arith.constant 0 : i32
    %c0_i32_0 = arith.constant 0 : i32
    %c0_i32_1 = arith.constant 0 : i32
    return %c0_i32, %c0_i32_0 : i32, i32
  }
  func.func @transform_4(%arg0: i32, %arg1: i32) -> (i32, i32) {
    %c0_i32 = arith.constant 0 : i32
    %c0_i32_0 = arith.constant 0 : i32
    %c0_i32_1 = arith.constant 0 : i32
    return %c0_i32, %c0_i32_0 : i32, i32
  }
  func.func @transform_5(%arg0: i32, %arg1: i32) -> (i32, i32) {
    %c0_i32 = arith.constant 0 : i32
    %c0_i32_0 = arith.constant 0 : i32
    %c0_i32_1 = arith.constant 0 : i32
    return %c0_i32, %c0_i32_0 : i32, i32
  }
  func.func @transform_6(%arg0: i32, %arg1: i32) -> (i32, i32) {
    %c0_i32 = arith.constant 0 : i32
    %c0_i32_0 = arith.constant 0 : i32
    %c0_i32_1 = arith.constant 0 : i32
    return %c0_i32, %c0_i32_0 : i32, i32
  }
  func.func @transform_7(%arg0: i32, %arg1: i32) -> (i32, i32) {
    %c0_i32 = arith.constant 0 : i32
    %c0_i32_0 = arith.constant 0 : i32
    %c0_i32_1 = arith.constant 0 : i32
    return %c0_i32, %c0_i32_0 : i32, i32
  }
  func.func @transform_8(%arg0: i32, %arg1: i32) -> (i32, i32, i32) {
    %c0_i32 = arith.constant 0 : i32
    %c0_i32_0 = arith.constant 0 : i32
    return %arg0, %c0_i32, %arg1 : i32, i32, i32
  }
}

</mosaic_0001>

<llo_original>
// kernel: self_attention.1
$region0: #{self_attention.1}
  #allocation0 [shape = 'u32[]', space=smem, size = 0x4, offset = 0x4, fixed_abs, tag = 'smem constant byte address 0x4 - core index']
  #allocation1 [shape = 'u32[144,128]{1,0:T(1,128)}', space=vmem, size = 0x12000, scoped, tag = 'internal scratch']
  #allocation2 [shape = 'bf16[16,256]{1,0:T(8,128)(2,1)}', space=vmem, size = 0x2000, scoped, tag = 'scratch operand']
  #allocation3 [shape = 'bf16[128,256]{1,0:T(8,128)(2,1)}', space=vmem, size = 0x10000, scoped, tag = 'scratch operand']
  #allocation4 [shape = 'f32[1]{0:T(128)S(6)}', space=smem, size = 0x200, scoped, tag = 'scoped memory for self_attention.1']
  %s0 = inlined_call_operand.<no memory space> [shape: f32[1], index: 0, kind: input, shape index: {}]
  %s1 = inlined_call_operand.vmem [shape: f32[2,128,256], index: 1, kind: input, shape index: {}]
  %s2 = inlined_call_operand.vmem [shape: bf16[16,128], index: 2, kind: input, shape index: {}]
  %s3 = inlined_call_operand.vmem [shape: bf16[16,128], index: 3, kind: input, shape index: {}]
  %s4 = inlined_call_operand.vmem [shape: bf16[128,128], index: 4, kind: input, shape index: {}]
  %s5 = inlined_call_operand.vmem [shape: f32[16,1], index: 5, kind: input, shape index: {}]
  %s6 = inlined_call_operand.vmem [shape: f32[16,1], index: 6, kind: input, shape index: {}]
  %s7 = inlined_call_operand.vmem [shape: f32[128,1], index: 7, kind: input, shape index: {}]
  %s8 = inlined_call_operand.vmem [shape: f32[2,128,256], index: 8, kind: output, shape index: {}]
  %s9 = sld [smem:[#allocation0]]
  $region69: #{self_attention.1} parent=0
    _
  %s11 = ssub.s32 1, %s9
  %s12 = scalar_select 0, %s11, %s9
  %13 = sst [smem:[#allocation4]] %s0
  loop: start=0, step=1, limit=4
  $region2: #{self_attention.1} parent=0 // loop_pre_header
    _
  $region3: #{self_attention.1} parent=0 // loop_header
    %s15 = sphi 0, %s19
    %p16 = scmp.ge.s32.totalorder %s15, 4
    %s22 = sphi 0, %s34
    %s23 = sphi 0, %s30
    %s24 = sphi 0, %s22
    %s25 = sphi 0, %s23
    %s26 = sphi 0, %s24
    %s27 = sphi 0, %s25
    %s35 = sphi 0, %s35
    %s37 = sphi 0, %s35
    %s38 = sphi 0, %s37
    %s52 = sphi 0, %s38
    %s58 = sphi 0, %s60
    %s61 = sphi 0, %s58
    %s62 = sphi 0, %s61
    %s78 = sphi 0, %s62
    %s82 = sphi 0, %s82
    %s84 = sphi 0, %s82
    %s85 = sphi 0, %s84
    %s99 = sphi 0, %s85
    %s103 = sphi 0, %s103
    %s105 = sphi 0, %s103
    %s106 = sphi 0, %s105
    %s120 = sphi 0, %s106
    %s124 = sphi 0, %s124
    %s126 = sphi 0, %s124
    %s127 = sphi 0, %s126
    %s141 = sphi 0, %s127
    %s145 = sphi 0, %s145
    %s147 = sphi 0, %s145
    %s148 = sphi 0, %s147
    %s162 = sphi 0, %s148
    %s166 = sphi 0, %s166
    %s168 = sphi 0, %s166
    %s169 = sphi 0, %s168
    %s183 = sphi 0, %s169
    %s187 = sphi 0, %s187
    %s189 = sphi 0, %s187
    %s190 = sphi 0, %s189
    %s204 = sphi 0, %s190
    %s212 = sphi 0, %s214
    %s215 = sphi 0, %s212
    %s216 = sphi 0, %s215
    %s232 = sphi 0, %s216
  $region4: #{self_attention.1} parent=0 // loop_header_branch
    %18 = sbr.rel (%p16) target = $region8
  $region5: #{self_attention.1} parent=0 // loop_body
    %s20 = ssub.s32 %s15, 1
    %s21 = ssub.s32 %s15, 2
    %s28 = sadd.s32 1, %s23
    %p29 = scmp.ge.s32.totalorder %s28, 1
    %s30 = scalar_select %p29, 0, %s28
    %s31 = sadd.s32 1, %s22
    %s32 = scalar_select %p29, %s31, %s22
    %p33 = scmp.ge.s32.totalorder %s32, 2
    %s34 = scalar_select %p33, 0, %s32
    %s36 = sadd.s32 %s35, 1
    %p39 = scmp.eq.s32.totalorder %s15, 1
    %p40 = scmp.ne.s32.totalorder %s35, %s37
    %p41 = scmp.eq.s32.totalorder %s15, 0
    %p42 = por %p40, %p41
    %p43 = scmp.ne.s32.totalorder %s35, %s37
    %p44 = scmp.eq.s32.totalorder %s20, 1
    %p45 = por %p43, %p44
    %p46 = scmp.ne.s32.totalorder %s37, %s38
    %p47 = scmp.eq.s32.totalorder %s20, 0
    %p48 = por %p46, %p47
    %p49 = scmp.ne.s32.totalorder %s37, %s38
    %p50 = scmp.eq.s32.totalorder %s21, 1
    %p51 = por %p49, %p50
    %p53 = scmp.ne.s32.totalorder %s38, %s52
    %p54 = scmp.eq.s32.totalorder %s21, 0
    %p55 = por %p53, %p54
    %s56 = ssub.s32 %s22, %s34
    %p57 = scmp.eq.s32.totalorder %s56, 0
    %s59 = sadd.s32 %s58, 1
    %s60 = scalar_select %p57, %s58, %s59
    %p63 = pneg %p57
    %p64 = scmp.eq.s32.totalorder %s15, 1
    %p65 = por %p63, %p64
    %p66 = scmp.ne.s32.totalorder %s58, %s61
    %p67 = scmp.eq.s32.totalorder %s15, 0
    %p68 = por %p66, %p67
    %p69 = scmp.ne.s32.totalorder %s58, %s61
    %p70 = scmp.eq.s32.totalorder %s20, 1
    %p71 = por %p69, %p70
    %p72 = scmp.ne.s32.totalorder %s61, %s62
    %p73 = scmp.eq.s32.totalorder %s20, 0
    %p74 = por %p72, %p73
    %p75 = scmp.ne.s32.totalorder %s61, %s62
    %p76 = scmp.eq.s32.totalorder %s21, 1
    %p77 = por %p75, %p76
    %p79 = scmp.ne.s32.totalorder %s62, %s78
    %p80 = scmp.eq.s32.totalorder %s21, 0
    %p81 = por %p79, %p80
    %s83 = sadd.s32 %s82, 1
    %p86 = scmp.eq.s32.totalorder %s15, 1
    %p87 = scmp.ne.s32.totalorder %s82, %s84
    %p88 = scmp.eq.s32.totalorder %s15, 0
    %p89 = por %p87, %p88
    %p90 = scmp.ne.s32.totalorder %s82, %s84
    %p91 = scmp.eq.s32.totalorder %s20, 1
    %p92 = por %p90, %p91
    %p93 = scmp.ne.s32.totalorder %s84, %s85
    %p94 = scmp.eq.s32.totalorder %s20, 0
    %p95 = por %p93, %p94
    %p96 = scmp.ne.s32.totalorder %s84, %s85
    %p97 = scmp.eq.s32.totalorder %s21, 1
    %p98 = por %p96, %p97
    %p100 = scmp.ne.s32.totalorder %s85, %s99
    %p101 = scmp.eq.s32.totalorder %s21, 0
    %p102 = por %p100, %p101
    %s104 = sadd.s32 %s103, 1
    %p107 = scmp.eq.s32.totalorder %s15, 1
    %p108 = scmp.ne.s32.totalorder %s103, %s105
    %p109 = scmp.eq.s32.totalorder %s15, 0
    %p110 = por %p108, %p109
    %p111 = scmp.ne.s32.totalorder %s103, %s105
    %p112 = scmp.eq.s32.totalorder %s20, 1
    %p113 = por %p111, %p112
    %p114 = scmp.ne.s32.totalorder %s105, %s106
    %p115 = scmp.eq.s32.totalorder %s20, 0
    %p116 = por %p114, %p115
    %p117 = scmp.ne.s32.totalorder %s105, %s106
    %p118 = scmp.eq.s32.totalorder %s21, 1
    %p119 = por %p117, %p118
    %p121 = scmp.ne.s32.totalorder %s106, %s120
    %p122 = scmp.eq.s32.totalorder %s21, 0
    %p123 = por %p121, %p122
    %s125 = sadd.s32 %s124, 1
    %p128 = scmp.eq.s32.totalorder %s15, 1
    %p129 = scmp.ne.s32.totalorder %s124, %s126
    %p130 = scmp.eq.s32.totalorder %s15, 0
    %p131 = por %p129, %p130
    %p132 = scmp.ne.s32.totalorder %s124, %s126
    %p133 = scmp.eq.s32.totalorder %s20, 1
    %p134 = por %p132, %p133
    %p135 = scmp.ne.s32.totalorder %s126, %s127
    %p136 = scmp.eq.s32.totalorder %s20, 0
    %p137 = por %p135, %p136
    %p138 = scmp.ne.s32.totalorder %s126, %s127
    %p139 = scmp.eq.s32.totalorder %s21, 1
    %p140 = por %p138, %p139
    %p142 = scmp.ne.s32.totalorder %s127, %s141
    %p143 = scmp.eq.s32.totalorder %s21, 0
    %p144 = por %p142, %p143
    %s146 = sadd.s32 %s145, 1
    %p149 = scmp.eq.s32.totalorder %s15, 1
    %p150 = scmp.ne.s32.totalorder %s145, %s147
    %p151 = scmp.eq.s32.totalorder %s15, 0
    %p152 = por %p150, %p151
    %p153 = scmp.ne.s32.totalorder %s145, %s147
    %p154 = scmp.eq.s32.totalorder %s20, 1
    %p155 = por %p153, %p154
    %p156 = scmp.ne.s32.totalorder %s147, %s148
    %p157 = scmp.eq.s32.totalorder %s20, 0
    %p158 = por %p156, %p157
    %p159 = scmp.ne.s32.totalorder %s147, %s148
    %p160 = scmp.eq.s32.totalorder %s21, 1
    %p161 = por %p159, %p160
    %p163 = scmp.ne.s32.totalorder %s148, %s162
    %p164 = scmp.eq.s32.totalorder %s21, 0
    %p165 = por %p163, %p164
    %s167 = sadd.s32 %s166, 1
    %p170 = scmp.eq.s32.totalorder %s15, 1
    %p171 = scmp.ne.s32.totalorder %s166, %s168
    %p172 = scmp.eq.s32.totalorder %s15, 0
    %p173 = por %p171, %p172
    %p174 = scmp.ne.s32.totalorder %s166, %s168
    %p175 = scmp.eq.s32.totalorder %s20, 1
    %p176 = por %p174, %p175
    %p177 = scmp.ne.s32.totalorder %s168, %s169
    %p178 = scmp.eq.s32.totalorder %s20, 0
    %p179 = por %p177, %p178
    %p180 = scmp.ne.s32.totalorder %s168, %s169
    %p181 = scmp.eq.s32.totalorder %s21, 1
    %p182 = por %p180, %p181
    %p184 = scmp.ne.s32.totalorder %s169, %s183
    %p185 = scmp.eq.s32.totalorder %s21, 0
    %p186 = por %p184, %p185
    %s188 = sadd.s32 %s187, 1
    %p191 = scmp.eq.s32.totalorder %s15, 1
    %p192 = scmp.ne.s32.totalorder %s187, %s189
    %p193 = scmp.eq.s32.totalorder %s15, 0
    %p194 = por %p192, %p193
    %p195 = scmp.ne.s32.totalorder %s187, %s189
    %p196 = scmp.eq.s32.totalorder %s20, 1
    %p197 = por %p195, %p196
    %p198 = scmp.ne.s32.totalorder %s189, %s190
    %p199 = scmp.eq.s32.totalorder %s20, 0
    %p200 = por %p198, %p199
    %p201 = scmp.ne.s32.totalorder %s189, %s190
    %p202 = scmp.eq.s32.totalorder %s21, 1
    %p203 = por %p201, %p202
    %p205 = scmp.ne.s32.totalorder %s190, %s204
    %p206 = scmp.eq.s32.totalorder %s21, 0
    %p207 = por %p205, %p206
    %s208 = ssub.s32 %s22, %s34
    %s209 = ssub.s32 %s23, %s30
    %s210 = sor.u32 %s208, %s209
    %p211 = scmp.eq.s32.totalorder %s210, 0
    %s213 = sadd.s32 %s212, 1
    %s214 = scalar_select %p211, %s212, %s213
    %p217 = pneg %p211
    %p218 = scmp.eq.s32.totalorder %s15, 1
    %p219 = por %p217, %p218
    %p220 = scmp.ne.s32.totalorder %s212, %s215
    %p221 = scmp.eq.s32.totalorder %s15, 0
    %p222 = por %p220, %p221
    %p223 = scmp.ne.s32.totalorder %s212, %s215
    %p224 = scmp.eq.s32.totalorder %s20, 1
    %p225 = por %p223, %p224
    %p226 = scmp.ne.s32.totalorder %s215, %s216
    %p227 = scmp.eq.s32.totalorder %s20, 0
    %p228 = por %p226, %p227
    %p229 = scmp.ne.s32.totalorder %s215, %s216
    %p230 = scmp.eq.s32.totalorder %s21, 1
    %p231 = por %p229, %p230
    %p233 = scmp.ne.s32.totalorder %s216, %s232
    %p234 = scmp.eq.s32.totalorder %s21, 0
    %p235 = por %p233, %p234
    %p236 = scmp.le.s32.totalorder 1, %s15
    %p237 = scmp.lt.s32.totalorder %s15, 3
    %p238 = pnand %p236, %p237
    %p239 = pneg %p238
    // Predicated region
    $region9: #{self_attention.1} parent=5 // pred_check
      _
    $region10: #{self_attention.1} parent=5 // pred_check_branch
      %241 = sbr.rel (%p238) target = $region12
    $region11: #{self_attention.1} parent=5 // pred_region
      %s242 = ssub.s32 %s15, 1
      // Predicated region
      $region13: #{self_attention.1} parent=11 // pred_check
        %p243 = pneg %p48
      $region14: #{self_attention.1} parent=11 // pred_check_branch
        %245 = sbr.rel (%p243) target = $region16
      $region15: #{self_attention.1} parent=11 // pred_region
        _
      $region16: #{self_attention.1} parent=11 // pred_fallthru
        _
      // Predicated region
      $region17: #{self_attention.1} parent=11 // pred_check
        %p246 = pneg %p95
      $region18: #{self_attention.1} parent=11 // pred_check_branch
        %248 = sbr.rel (%p246) target = $region20
      $region19: #{self_attention.1} parent=11 // pred_region
        _
      $region20: #{self_attention.1} parent=11 // pred_fallthru
        _
      // Predicated region
      $region21: #{self_attention.1} parent=11 // pred_check
        %p249 = pneg %p116
      $region22: #{self_attention.1} parent=11 // pred_check_branch
        %251 = sbr.rel (%p249) target = $region24
      $region23: #{self_attention.1} parent=11 // pred_region
        _
      $region24: #{self_attention.1} parent=11 // pred_fallthru
        _
      // Predicated region
      $region25: #{self_attention.1} parent=11 // pred_check
        %p252 = pneg %p137
      $region26: #{self_attention.1} parent=11 // pred_check_branch
        %254 = sbr.rel (%p252) target = $region28
      $region27: #{self_attention.1} parent=11 // pred_region
        _
      $region28: #{self_attention.1} parent=11 // pred_fallthru
        _
      // Predicated region
      $region29: #{self_attention.1} parent=11 // pred_check
        %p255 = pneg %p158
      $region30: #{self_attention.1} parent=11 // pred_check_branch
        %257 = sbr.rel (%p255) target = $region32
      $region31: #{self_attention.1} parent=11 // pred_region
        _
      $region32: #{self_attention.1} parent=11 // pred_fallthru
        _
      // Predicated region
      $region33: #{self_attention.1} parent=11 // pred_check
        %p258 = pneg %p179
      $region34: #{self_attention.1} parent=11 // pred_check_branch
        %260 = sbr.rel (%p258) target = $region36
      $region35: #{self_attention.1} parent=11 // pred_region
        _
      $region36: #{self_attention.1} parent=11 // pred_fallthru
        _
      // Predicated region
      $region37: #{self_attention.1} parent=11 // pred_check
        %p261 = pneg %p200
      $region38: #{self_attention.1} parent=11 // pred_check_branch
        %263 = sbr.rel (%p261) target = $region40
      $region39: #{self_attention.1} parent=11 // pred_region
        _
      $region40: #{self_attention.1} parent=11 // pred_fallthru
        _
    $region12: #{self_attention.1} parent=5 // pred_fallthru
      _
    %p264 = scmp.lt.s32.totalorder %s15, 2
    // Predicated region
    $region41: #{self_attention.1} parent=5 // pred_check
      %p265 = pneg %p264
    $region42: #{self_attention.1} parent=5 // pred_check_branch
      %267 = sbr.rel (%p265) target = $region44
    $region43: #{self_attention.1} parent=5 // pred_region
      // Predicated region
      $region45: #{self_attention.1} parent=43 // pred_check
        %p268 = pneg %p68
      $region46: #{self_attention.1} parent=43 // pred_check_branch
        %270 = sbr.rel (%p268) target = $region48
      $region47: #{self_attention.1} parent=43 // pred_region
        %p271 = scmp.lt.s32.totalorder %s22, 1
        %s272 = scalar_select %p271, %s22, 1
        %s273 = smul.addr %s272, 32
        %s274 = smul.addr %s273, 8
        %s275 = scalar_lea.vmem %s1, %s274
      $region48: #{self_attention.1} parent=43 // pred_fallthru
        _
    $region44: #{self_attention.1} parent=5 // pred_fallthru
      _
    %p276 = scmp.le.s32.totalorder 1, %s15
    %p277 = scmp.lt.s32.totalorder %s15, 3
    %p278 = pnand %p276, %p277
    %p279 = pneg %p278
    // Predicated region
    $region49: #{self_attention.1} parent=5 // pred_check
      _
    $region50: #{self_attention.1} parent=5 // pred_check_branch
      %281 = sbr.rel (%p278) target = $region52
    $region51: #{self_attention.1} parent=5 // pred_region
      %s282 = ssub.s32 %s15, 1
      %p283 = pneg %p48
      %p284 = pneg %p45
      %p285 = scmp.lt.s32.totalorder %s24, 1
      %s286 = scalar_select %p285, %s24, 1
      %s287 = smul.addr %s286, 32
      %s288 = smul.addr %s287, 8
      %s289 = scalar_lea.vmem %s1, %s288
      %p290 = pneg %p74
      %p291 = pneg %p71
      %p292 = pneg %p95
      %p293 = pneg %p92
      %p294 = pneg %p116
      %p295 = pneg %p113
      %p296 = pneg %p137
      %p297 = pneg %p134
      %p298 = pneg %p158
      %p299 = pneg %p155
      %p300 = pneg %p179
      %p301 = pneg %p176
      %p302 = pneg %p200
      %p303 = pneg %p197
      %p304 = pneg %p228
      %p305 = pneg %p225
      %s306 = smul.u32 2, %s25
      %p307 = scmp.lt.s32.totalorder %s24, 1
      %s308 = scalar_select %p307, %s24, 1
      %p309 = scmp.lt.s32.totalorder %s306, 1
      %s310 = scalar_select %p309, %s306, 1
      %s311 = smul.addr %s308, 32
      %s312 = sadd.s32 %s310, %s311
      %s313 = smul.addr %s312, 8
      %s314 = scalar_lea.vmem %s8, %s313
      %p315 = scmp.lt.s32.totalorder %s24, 1
      %s316 = scalar_select %p315, %s24, 1
      %s317 = smul.addr %s316, 32
      %s318 = smul.addr %s317, 8
      %s319 = scalar_lea.vmem %s1, %s318
      %s320 = smul.u32 2, %s25
      %p321 = scmp.lt.s32.totalorder %s24, 1
      %s322 = scalar_select %p321, %s24, 1
      %p323 = scmp.lt.s32.totalorder %s320, 1
      %s324 = scalar_select %p323, %s320, 1
      %s325 = smul.addr %s322, 32
      %s326 = sadd.s32 %s324, %s325
      %s327 = smul.addr %s326, 8
      %s328 = scalar_lea.vmem %s8, %s327
      %s329 = smul.u32 2, %s25
      %p331 = scmp.eq.s32.totalorder %s25, 0
      // Predicated region
      $region53: #{self_attention.1} parent=51 // pred_check
        %p332 = pneg %p331
      $region54: #{self_attention.1} parent=51 // pred_check_branch
        %334 = sbr.rel (%p332) target = $region56
      $region55: #{self_attention.1} parent=51 // pred_region
        %v335 = vld [vmem:[%s319] sm:$0xff]
        %v336 = vld [vmem:[%s319 + $0x8] sm:$0xff]
        %v337 = vld [vmem:[%s319 + $0x10] sm:$0xff]
        %v338 = vld [vmem:[%s319 + $0x18] sm:$0xff]
        %v339 = vld [vmem:[%s319 + $0x20] sm:$0xff]
        %v340 = vld [vmem:[%s319 + $0x28] sm:$0xff]
        %v341 = vld [vmem:[%s319 + $0x30] sm:$0xff]
        %v342 = vld [vmem:[%s319 + $0x38] sm:$0xff]
        %v343 = vld [vmem:[%s319 + $0x40] sm:$0xff]
        %v344 = vld [vmem:[%s319 + $0x48] sm:$0xff]
        %v345 = vld [vmem:[%s319 + $0x50] sm:$0xff]
        %v346 = vld [vmem:[%s319 + $0x58] sm:$0xff]
        %v347 = vld [vmem:[%s319 + $0x60] sm:$0xff]
        %v348 = vld [vmem:[%s319 + $0x68] sm:$0xff]
        %v349 = vld [vmem:[%s319 + $0x70] sm:$0xff]
        %v350 = vld [vmem:[%s319 + $0x78] sm:$0xff]
        %v351 = vld [vmem:[%s319 + $0x80] sm:$0xff]
        %v352 = vld [vmem:[%s319 + $0x88] sm:$0xff]
        %v353 = vld [vmem:[%s319 + $0x90] sm:$0xff]
        %v354 = vld [vmem:[%s319 + $0x98] sm:$0xff]
        %v355 = vld [vmem:[%s319 + $0xa0] sm:$0xff]
        %v356 = vld [vmem:[%s319 + $0xa8] sm:$0xff]
        %v357 = vld [vmem:[%s319 + $0xb0] sm:$0xff]
        %v358 = vld [vmem:[%s319 + $0xb8] sm:$0xff]
        %v359 = vld [vmem:[%s319 + $0xc0] sm:$0xff]
        %v360 = vld [vmem:[%s319 + $0xc8] sm:$0xff]
        %v361 = vld [vmem:[%s319 + $0xd0] sm:$0xff]
        %v362 = vld [vmem:[%s319 + $0xd8] sm:$0xff]
        %v363 = vld [vmem:[%s319 + $0xe0] sm:$0xff]
        %v364 = vld [vmem:[%s319 + $0xe8] sm:$0xff]
        %v365 = vld [vmem:[%s319 + $0xf0] sm:$0xff]
        %v366 = vld [vmem:[%s319 + $0xf8] sm:$0xff]
        %v367 = vpack.c.bf16 %v337, %v335
        %v368 = vpack.c.bf16 %v338, %v336
        %v369 = vpack.c.bf16 %v341, %v339
        %v370 = vpack.c.bf16 %v342, %v340
        %v371 = vpack.c.bf16 %v345, %v343
        %v372 = vpack.c.bf16 %v346, %v344
        %v373 = vpack.c.bf16 %v349, %v347
        %v374 = vpack.c.bf16 %v350, %v348
        %v375 = vpack.c.bf16 %v353, %v351
        %v376 = vpack.c.bf16 %v354, %v352
        %v377 = vpack.c.bf16 %v357, %v355
        %v378 = vpack.c.bf16 %v358, %v356
        %v379 = vpack.c.bf16 %v361, %v359
        %v380 = vpack.c.bf16 %v362, %v360
        %v381 = vpack.c.bf16 %v365, %v363
        %v382 = vpack.c.bf16 %v366, %v364
        %v383 = vld [vmem:[%s3] sm:$0xf]
        %v384 = vld [vmem:[%s3 + $0x4] sm:$0xf]
        %v385 = vld [vmem:[%s6] sm:$0xff]
        %v386 = vld [vmem:[%s6 + $0x8] sm:$0xff]
        %388 = vset.pattern.permute.xlu0 0
        %389 = vperm.xlu0 %388, %v385
        %v390 = vpop.permute.xlu0 %389
        %393 = vset.pattern.permute.xlu0 0
        %394 = vperm.xlu0 %393, %v386
        %v395 = vpop.permute.xlu0 %394
        %v399 = vunpack.c.l.b16 %v383
        %v400 = vunpack.c.l.b16 %v384
        %v401 = vpack.c.b16 %v400, %v399
        %403 = vmatprep.subr.bf16.mxu0 %v382
        %404 = vmatpush1.bf16.msra.mxu0 %v381
        %405 = vmatprep.subr.bf16.mxu0 %v380
        %406 = vmatpush1.bf16.msra.mxu0 %v379
        %407 = vmatprep.subr.bf16.mxu0 %v378
        %408 = vmatpush1.bf16.msra.mxu0 %v377
        %409 = vmatprep.subr.bf16.mxu0 %v376
        %410 = vmatpush1.bf16.msra.mxu0 %v375
        %411 = vmatprep.subr.bf16.mxu0 %v374
        %412 = vmatpush1.bf16.msra.mxu0 %v373
        %413 = vmatprep.subr.bf16.mxu0 %v372
        %414 = vmatpush1.bf16.msra.mxu0 %v371
        %415 = vmatprep.subr.bf16.mxu0 %v370
        %416 = vmatpush1.bf16.msra.mxu0 %v369
        %417 = vmatprep.subr.bf16.mxu0 %v368
        %418 = vmatpush1.bf16.msra.mxu0 %v367
        %419 = vmatprep.subr.bf16.mxu0 0
        %420 = vmatpush2.bf16.msra.mxu0 0
        %421 = vmatprep.subr.bf16.mxu0 0
        %422 = vmatpush2.bf16.msra.mxu0 0
        %423 = vmatprep.subr.bf16.mxu0 0
        %424 = vmatpush2.bf16.msra.mxu0 0
        %425 = vmatprep.subr.bf16.mxu0 0
        %426 = vmatpush2.bf16.msra.mxu0 0
        %427 = vmatprep.subr.bf16.mxu0 0
        %428 = vmatpush2.bf16.msra.mxu0 0
        %429 = vmatprep.subr.bf16.mxu0 0
        %430 = vmatpush2.bf16.msra.mxu0 0
        %431 = vmatprep.subr.bf16.mxu0 0
        %432 = vmatpush2.bf16.msra.mxu0 0
        %433 = vmatprep.subr.bf16.mxu0 0
        %434 = vmatpush2.bf16.msra.mxu0 0
        %435 = vmatprep.mubr.bf16.mxu0 0
        %436 = vmatmul.mubr.bf16.gmra.mxu0 %v401
        %v437 = vpop.f32.mrf.mxu0
        %v438 = vadd.f32 %v390, %v437
        %v439 = vpop.f32.mrf.mxu0
        %v440 = vadd.f32 %v390, %v439
        %v441 = vpop.f32.mrf.mxu0
        %v442 = vadd.f32 %v395, %v441
        %v443 = vpop.f32.mrf.mxu0
        %v444 = vadd.f32 %v395, %v443
        %445 = vdwg.mxu0
        %v446 = vld [vmem:[%s4] sm:$0xf]
        %v447 = vld [vmem:[%s4 + $0x4] sm:$0xf]
        %v448 = vld [vmem:[%s4 + $0x8] sm:$0xf]
        %v449 = vld [vmem:[%s4 + $0xc] sm:$0xf]
        %v450 = vld [vmem:[%s4 + $0x10] sm:$0xf]
        %v451 = vld [vmem:[%s4 + $0x14] sm:$0xf]
        %v452 = vld [vmem:[%s4 + $0x18] sm:$0xf]
        %v453 = vld [vmem:[%s4 + $0x1c] sm:$0xf]
        %v454 = vld [vmem:[%s4 + $0x20] sm:$0xf]
        %v455 = vld [vmem:[%s4 + $0x24] sm:$0xf]
        %v456 = vld [vmem:[%s4 + $0x28] sm:$0xf]
        %v457 = vld [vmem:[%s4 + $0x2c] sm:$0xf]
        %v458 = vld [vmem:[%s4 + $0x30] sm:$0xf]
        %v459 = vld [vmem:[%s4 + $0x34] sm:$0xf]
        %v460 = vld [vmem:[%s4 + $0x38] sm:$0xf]
        %v461 = vld [vmem:[%s4 + $0x3c] sm:$0xf]
        %v462 = vld [vmem:[%s7] sm:$0xff]
        %v463 = vld [vmem:[%s7 + $0x8] sm:$0xff]
        %v464 = vld [vmem:[%s7 + $0x10] sm:$0xff]
        %v465 = vld [vmem:[%s7 + $0x18] sm:$0xff]
        %v466 = vld [vmem:[%s7 + $0x20] sm:$0xff]
        %v467 = vld [vmem:[%s7 + $0x28] sm:$0xff]
        %v468 = vld [vmem:[%s7 + $0x30] sm:$0xff]
        %v469 = vld [vmem:[%s7 + $0x38] sm:$0xff]
        %v470 = vld [vmem:[%s7 + $0x40] sm:$0xff]
        %v471 = vld [vmem:[%s7 + $0x48] sm:$0xff]
        %v472 = vld [vmem:[%s7 + $0x50] sm:$0xff]
        %v473 = vld [vmem:[%s7 + $0x58] sm:$0xff]
        %v474 = vld [vmem:[%s7 + $0x60] sm:$0xff]
        %v475 = vld [vmem:[%s7 + $0x68] sm:$0xff]
        %v476 = vld [vmem:[%s7 + $0x70] sm:$0xff]
        %v477 = vld [vmem:[%s7 + $0x78] sm:$0xff]
        %479 = vset.pattern.permute.xlu0 0
        %480 = vperm.xlu0 %479, %v462
        %v481 = vpop.permute.xlu0 %480
        %484 = vset.pattern.permute.xlu0 0
        %485 = vperm.xlu0 %484, %v463
        %v486 = vpop.permute.xlu0 %485
        %489 = vset.pattern.permute.xlu0 0
        %490 = vperm.xlu0 %489, %v464
        %v491 = vpop.permute.xlu0 %490
        %494 = vset.pattern.permute.xlu0 0
        %495 = vperm.xlu0 %494, %v465
        %v496 = vpop.permute.xlu0 %495
        %499 = vset.pattern.permute.xlu0 0
        %500 = vperm.xlu0 %499, %v466
        %v501 = vpop.permute.xlu0 %500
        %504 = vset.pattern.permute.xlu0 0
        %505 = vperm.xlu0 %504, %v467
        %v506 = vpop.permute.xlu0 %505
        %509 = vset.pattern.permute.xlu0 0
        %510 = vperm.xlu0 %509, %v468
        %v511 = vpop.permute.xlu0 %510
        %514 = vset.pattern.permute.xlu0 0
        %515 = vperm.xlu0 %514, %v469
        %v516 = vpop.permute.xlu0 %515
        %519 = vset.pattern.permute.xlu0 0
        %520 = vperm.xlu0 %519, %v470
        %v521 = vpop.permute.xlu0 %520
        %524 = vset.pattern.permute.xlu0 0
        %525 = vperm.xlu0 %524, %v471
        %v526 = vpop.permute.xlu0 %525
        %529 = vset.pattern.permute.xlu0 0
        %530 = vperm.xlu0 %529, %v472
        %v531 = vpop.permute.xlu0 %530
        %534 = vset.pattern.permute.xlu0 0
        %535 = vperm.xlu0 %534, %v473
        %v536 = vpop.permute.xlu0 %535
        %539 = vset.pattern.permute.xlu0 0
        %540 = vperm.xlu0 %539, %v474
        %v541 = vpop.permute.xlu0 %540
        %544 = vset.pattern.permute.xlu0 0
        %545 = vperm.xlu0 %544, %v475
        %v546 = vpop.permute.xlu0 %545
        %549 = vset.pattern.permute.xlu0 0
        %550 = vperm.xlu0 %549, %v476
        %v551 = vpop.permute.xlu0 %550
        %554 = vset.pattern.permute.xlu0 0
        %555 = vperm.xlu0 %554, %v477
        %v556 = vpop.permute.xlu0 %555
        %v574 = vunpack.c.l.b16 %v446
        %v575 = vunpack.c.l.b16 %v447
        %v576 = vunpack.c.l.b16 %v448
        %v577 = vunpack.c.l.b16 %v449
        %v578 = vunpack.c.l.b16 %v450
        %v579 = vunpack.c.l.b16 %v451
        %v580 = vunpack.c.l.b16 %v452
        %v581 = vunpack.c.l.b16 %v453
        %v582 = vunpack.c.l.b16 %v454
        %v583 = vunpack.c.l.b16 %v455
        %v584 = vunpack.c.l.b16 %v456
        %v585 = vunpack.c.l.b16 %v457
        %v586 = vunpack.c.l.b16 %v458
        %v587 = vunpack.c.l.b16 %v459
        %v588 = vunpack.c.l.b16 %v460
        %v589 = vunpack.c.l.b16 %v461
        %v590 = vpack.c.b16 %v575, %v574
        %v591 = vpack.c.b16 %v577, %v576
        %v592 = vpack.c.b16 %v579, %v578
        %v593 = vpack.c.b16 %v581, %v580
        %v594 = vpack.c.b16 %v583, %v582
        %v595 = vpack.c.b16 %v585, %v584
        %v596 = vpack.c.b16 %v587, %v586
        %v597 = vpack.c.b16 %v589, %v588
        %606 = vmatprep.subr.bf16.mxu0 %v382
        %607 = vmatpush1.bf16.msra.mxu0 %v381
        %608 = vmatprep.subr.bf16.mxu0 %v380
        %609 = vmatpush1.bf16.msra.mxu0 %v379
        %610 = vmatprep.subr.bf16.mxu0 %v378
        %611 = vmatpush1.bf16.msra.mxu0 %v377
        %612 = vmatprep.subr.bf16.mxu0 %v376
        %613 = vmatpush1.bf16.msra.mxu0 %v375
        %614 = vmatprep.subr.bf16.mxu0 %v374
        %615 = vmatpush1.bf16.msra.mxu0 %v373
        %616 = vmatprep.subr.bf16.mxu0 %v372
        %617 = vmatpush1.bf16.msra.mxu0 %v371
        %618 = vmatprep.subr.bf16.mxu0 %v370
        %619 = vmatpush1.bf16.msra.mxu0 %v369
        %620 = vmatprep.subr.bf16.mxu0 %v368
        %621 = vmatpush1.bf16.msra.mxu0 %v367
        %622 = vmatprep.subr.bf16.mxu0 0
        %623 = vmatpush2.bf16.msra.mxu0 0
        %624 = vmatprep.subr.bf16.mxu0 0
        %625 = vmatpush2.bf16.msra.mxu0 0
        %626 = vmatprep.subr.bf16.mxu0 0
        %627 = vmatpush2.bf16.msra.mxu0 0
        %628 = vmatprep.subr.bf16.mxu0 0
        %629 = vmatpush2.bf16.msra.mxu0 0
        %630 = vmatprep.subr.bf16.mxu0 0
        %631 = vmatpush2.bf16.msra.mxu0 0
        %632 = vmatprep.subr.bf16.mxu0 0
        %633 = vmatpush2.bf16.msra.mxu0 0
        %634 = vmatprep.subr.bf16.mxu0 0
        %635 = vmatpush2.bf16.msra.mxu0 0
        %636 = vmatprep.subr.bf16.mxu0 0
        %637 = vmatpush2.bf16.msra.mxu0 0
        %638 = vmatprep.mubr.bf16.mxu0 0
        %639 = vmatmul.mubr.bf16.gmra.mxu0 %v590
        %v640 = vpop.f32.mrf.mxu0
        %v641 = vadd.f32 %v481, %v640
        %v642 = vpop.f32.mrf.mxu0
        %v643 = vadd.f32 %v481, %v642
        %v644 = vpop.f32.mrf.mxu0
        %v645 = vadd.f32 %v486, %v644
        %v646 = vpop.f32.mrf.mxu0
        %v647 = vadd.f32 %v486, %v646
        %648 = vmatprep.mubr.bf16.mxu0 0
        %649 = vmatmul.mubr.bf16.gmra.mxu0 %v591
        %v650 = vpop.f32.mrf.mxu0
        %v651 = vadd.f32 %v491, %v650
        %v652 = vpop.f32.mrf.mxu0
        %v653 = vadd.f32 %v491, %v652
        %v654 = vpop.f32.mrf.mxu0
        %v655 = vadd.f32 %v496, %v654
        %v656 = vpop.f32.mrf.mxu0
        %v657 = vadd.f32 %v496, %v656
        %658 = vmatprep.mubr.bf16.mxu0 0
        %659 = vmatmul.mubr.bf16.gmra.mxu0 %v592
        %v660 = vpop.f32.mrf.mxu0
        %v661 = vadd.f32 %v501, %v660
        %v662 = vpop.f32.mrf.mxu0
        %v663 = vadd.f32 %v501, %v662
        %v664 = vpop.f32.mrf.mxu0
        %v665 = vadd.f32 %v506, %v664
        %v666 = vpop.f32.mrf.mxu0
        %v667 = vadd.f32 %v506, %v666
        %668 = vmatprep.mubr.bf16.mxu0 0
        %669 = vmatmul.mubr.bf16.gmra.mxu0 %v593
        %v670 = vpop.f32.mrf.mxu0
        %v671 = vadd.f32 %v511, %v670
        %v672 = vpop.f32.mrf.mxu0
        %v673 = vadd.f32 %v511, %v672
        %v674 = vpop.f32.mrf.mxu0
        %v675 = vadd.f32 %v516, %v674
        %v676 = vpop.f32.mrf.mxu0
        %v677 = vadd.f32 %v516, %v676
        %678 = vmatprep.mubr.bf16.mxu0 0
        %679 = vmatmul.mubr.bf16.gmra.mxu0 %v594
        %v680 = vpop.f32.mrf.mxu0
        %v681 = vadd.f32 %v521, %v680
        %v682 = vpop.f32.mrf.mxu0
        %v683 = vadd.f32 %v521, %v682
        %v684 = vpop.f32.mrf.mxu0
        %v685 = vadd.f32 %v526, %v684
        %v686 = vpop.f32.mrf.mxu0
        %v687 = vadd.f32 %v526, %v686
        %688 = vmatprep.mubr.bf16.mxu0 0
        %689 = vmatmul.mubr.bf16.gmra.mxu0 %v595
        %v690 = vpop.f32.mrf.mxu0
        %v691 = vadd.f32 %v531, %v690
        %v692 = vpop.f32.mrf.mxu0
        %v693 = vadd.f32 %v531, %v692
        %v694 = vpop.f32.mrf.mxu0
        %v695 = vadd.f32 %v536, %v694
        %v696 = vpop.f32.mrf.mxu0
        %v697 = vadd.f32 %v536, %v696
        %698 = vmatprep.mubr.bf16.mxu0 0
        %699 = vmatmul.mubr.bf16.gmra.mxu0 %v596
        %v700 = vpop.f32.mrf.mxu0
        %v701 = vadd.f32 %v541, %v700
        %v702 = vpop.f32.mrf.mxu0
        %v703 = vadd.f32 %v541, %v702
        %v704 = vpop.f32.mrf.mxu0
        %v705 = vadd.f32 %v546, %v704
        %v706 = vpop.f32.mrf.mxu0
        %v707 = vadd.f32 %v546, %v706
        %708 = vmatprep.mubr.bf16.mxu0 0
        %709 = vmatmul.mubr.bf16.gmra.mxu0 %v597
        %v710 = vpop.f32.mrf.mxu0
        %v711 = vadd.f32 %v551, %v710
        %v712 = vpop.f32.mrf.mxu0
        %v713 = vadd.f32 %v551, %v712
        %v714 = vpop.f32.mrf.mxu0
        %v715 = vadd.f32 %v556, %v714
        %v716 = vpop.f32.mrf.mxu0
        %v717 = vadd.f32 %v556, %v716
        %718 = vdwg.mxu0
        %v719 = vpack.c.bf16 %v442, %v438
        %v720 = vpack.c.bf16 %v444, %v440
        %v723 = vunpack.c.l.b16 %v719
        %v724 = vunpack.c.l.b16 %v720
        %v725 = vunpack.c.h.b16 %v719
        %v726 = vunpack.c.h.b16 %v720
        %v727 = vpack.c.b16 %v724, %v723
        %v728 = vpack.c.b16 %v726, %v725
        %731 = vst [vmem:[#allocation2] sm:$0xff] %v727
        %732 = vst [vmem:[#allocation2 + $0x8] sm:$0xff] %v728
        %v733 = vpack.c.bf16 %v645, %v641
        %v734 = vpack.c.bf16 %v647, %v643
        %v735 = vpack.c.bf16 %v655, %v651
        %v736 = vpack.c.bf16 %v657, %v653
        %v737 = vpack.c.bf16 %v665, %v661
        %v738 = vpack.c.bf16 %v667, %v663
        %v739 = vpack.c.bf16 %v675, %v671
        %v740 = vpack.c.bf16 %v677, %v673
        %v741 = vpack.c.bf16 %v685, %v681
        %v742 = vpack.c.bf16 %v687, %v683
        %v743 = vpack.c.bf16 %v695, %v691
        %v744 = vpack.c.bf16 %v697, %v693
        %v745 = vpack.c.bf16 %v705, %v701
        %v746 = vpack.c.bf16 %v707, %v703
        %v747 = vpack.c.bf16 %v715, %v711
        %v748 = vpack.c.bf16 %v717, %v713
        %v765 = vunpack.c.l.b16 %v733
        %v766 = vunpack.c.l.b16 %v734
        %v767 = vunpack.c.h.b16 %v733
        %v768 = vunpack.c.h.b16 %v734
        %v769 = vunpack.c.l.b16 %v735
        %v770 = vunpack.c.l.b16 %v736
        %v771 = vunpack.c.h.b16 %v735
        %v772 = vunpack.c.h.b16 %v736
        %v773 = vunpack.c.l.b16 %v737
        %v774 = vunpack.c.l.b16 %v738
        %v775 = vunpack.c.h.b16 %v737
        %v776 = vunpack.c.h.b16 %v738
        %v777 = vunpack.c.l.b16 %v739
        %v778 = vunpack.c.l.b16 %v740
        %v779 = vunpack.c.h.b16 %v739
        %v780 = vunpack.c.h.b16 %v740
        %v781 = vunpack.c.l.b16 %v741
        %v782 = vunpack.c.l.b16 %v742
        %v783 = vunpack.c.h.b16 %v741
        %v784 = vunpack.c.h.b16 %v742
        %v785 = vunpack.c.l.b16 %v743
        %v786 = vunpack.c.l.b16 %v744
        %v787 = vunpack.c.h.b16 %v743
        %v788 = vunpack.c.h.b16 %v744
        %v789 = vunpack.c.l.b16 %v745
        %v790 = vunpack.c.l.b16 %v746
        %v791 = vunpack.c.h.b16 %v745
        %v792 = vunpack.c.h.b16 %v746
        %v793 = vunpack.c.l.b16 %v747
        %v794 = vunpack.c.l.b16 %v748
        %v795 = vunpack.c.h.b16 %v747
        %v796 = vunpack.c.h.b16 %v748
        %v797 = vpack.c.b16 %v766, %v765
        %v798 = vpack.c.b16 %v768, %v767
        %v799 = vpack.c.b16 %v770, %v769
        %v800 = vpack.c.b16 %v772, %v771
        %v801 = vpack.c.b16 %v774, %v773
        %v802 = vpack.c.b16 %v776, %v775
        %v803 = vpack.c.b16 %v778, %v777
        %v804 = vpack.c.b16 %v780, %v779
        %v805 = vpack.c.b16 %v782, %v781
        %v806 = vpack.c.b16 %v784, %v783
        %v807 = vpack.c.b16 %v786, %v785
        %v808 = vpack.c.b16 %v788, %v787
        %v809 = vpack.c.b16 %v790, %v789
        %v810 = vpack.c.b16 %v792, %v791
        %v811 = vpack.c.b16 %v794, %v793
        %v812 = vpack.c.b16 %v796, %v795
        %829 = vst [vmem:[#allocation3] sm:$0xff] %v797
        %830 = vst [vmem:[#allocation3 + $0x8] sm:$0xff] %v798
        %831 = vst [vmem:[#allocation3 + $0x10] sm:$0xff] %v799
        %832 = vst [vmem:[#allocation3 + $0x18] sm:$0xff] %v800
        %833 = vst [vmem:[#allocation3 + $0x20] sm:$0xff] %v801
        %834 = vst [vmem:[#allocation3 + $0x28] sm:$0xff] %v802
        %835 = vst [vmem:[#allocation3 + $0x30] sm:$0xff] %v803
        %836 = vst [vmem:[#allocation3 + $0x38] sm:$0xff] %v804
        %837 = vst [vmem:[#allocation3 + $0x40] sm:$0xff] %v805
        %838 = vst [vmem:[#allocation3 + $0x48] sm:$0xff] %v806
        %839 = vst [vmem:[#allocation3 + $0x50] sm:$0xff] %v807
        %840 = vst [vmem:[#allocation3 + $0x58] sm:$0xff] %v808
        %841 = vst [vmem:[#allocation3 + $0x60] sm:$0xff] %v809
        %842 = vst [vmem:[#allocation3 + $0x68] sm:$0xff] %v810
        %843 = vst [vmem:[#allocation3 + $0x70] sm:$0xff] %v811
        %844 = vst [vmem:[#allocation3 + $0x78] sm:$0xff] %v812
      $region56: #{self_attention.1} parent=51 // pred_fallthru
        _
      %s845 = smul.u32 %s25, 256
      %s846 = sshra.s32 %s845, 7
      %s847 = sand.u32 %s845, 127
      %s848 = smul.addr %s846, 8
      %s849 = scalar_lea.vmem %s319, %s848
      %v850 = vld [vmem:[%s849] sm:$0xff]
      %v851 = vld [vmem:[%s849 + $0x8] sm:$0xff]
      %v852 = vld [vmem:[%s849 + $0x10] sm:$0xff]
      %v853 = vld [vmem:[%s849 + $0x18] sm:$0xff]
      %v854 = vld [vmem:[%s849 + $0x20] sm:$0xff]
      %v855 = vld [vmem:[%s849 + $0x28] sm:$0xff]
      %v856 = vld [vmem:[%s849 + $0x30] sm:$0xff]
      %v857 = vld [vmem:[%s849 + $0x38] sm:$0xff]
      %v858 = vld [vmem:[%s849 + $0x40] sm:$0xff]
      %v859 = vld [vmem:[%s849 + $0x48] sm:$0xff]
      %v860 = vld [vmem:[%s849 + $0x50] sm:$0xff]
      %v861 = vld [vmem:[%s849 + $0x58] sm:$0xff]
      %v862 = vld [vmem:[%s849 + $0x60] sm:$0xff]
      %v863 = vld [vmem:[%s849 + $0x68] sm:$0xff]
      %v864 = vld [vmem:[%s849 + $0x70] sm:$0xff]
      %v865 = vld [vmem:[%s849 + $0x78] sm:$0xff]
      %v866 = vld [vmem:[%s849 + $0x80] sm:$0xff]
      %v867 = vld [vmem:[%s849 + $0x88] sm:$0xff]
      %v868 = vld [vmem:[%s849 + $0x90] sm:$0xff]
      %v869 = vld [vmem:[%s849 + $0x98] sm:$0xff]
      %v870 = vld [vmem:[%s849 + $0xa0] sm:$0xff]
      %v871 = vld [vmem:[%s849 + $0xa8] sm:$0xff]
      %v872 = vld [vmem:[%s849 + $0xb0] sm:$0xff]
      %v873 = vld [vmem:[%s849 + $0xb8] sm:$0xff]
      %v874 = vld [vmem:[%s849 + $0xc0] sm:$0xff]
      %v875 = vld [vmem:[%s849 + $0xc8] sm:$0xff]
      %v876 = vld [vmem:[%s849 + $0xd0] sm:$0xff]
      %v877 = vld [vmem:[%s849 + $0xd8] sm:$0xff]
      %v878 = vld [vmem:[%s849 + $0xe0] sm:$0xff]
      %v879 = vld [vmem:[%s849 + $0xe8] sm:$0xff]
      %v880 = vld [vmem:[%s849 + $0xf0] sm:$0xff]
      %v881 = vld [vmem:[%s849 + $0xf8] sm:$0xff]
      %v882 = vpack.c.bf16 %v852, %v850
      %v883 = vpack.c.bf16 %v853, %v851
      %v884 = vpack.c.bf16 %v856, %v854
      %v885 = vpack.c.bf16 %v857, %v855
      %v886 = vpack.c.bf16 %v860, %v858
      %v887 = vpack.c.bf16 %v861, %v859
      %v888 = vpack.c.bf16 %v864, %v862
      %v889 = vpack.c.bf16 %v865, %v863
      %v890 = vpack.c.bf16 %v868, %v866
      %v891 = vpack.c.bf16 %v869, %v867
      %v892 = vpack.c.bf16 %v872, %v870
      %v893 = vpack.c.bf16 %v873, %v871
      %v894 = vpack.c.bf16 %v876, %v874
      %v895 = vpack.c.bf16 %v877, %v875
      %v896 = vpack.c.bf16 %v880, %v878
      %v897 = vpack.c.bf16 %v881, %v879
      %v898 = vld [vmem:[%s2] sm:$0xf]
      %v899 = vld [vmem:[%s2 + $0x4] sm:$0xf]
      %v900 = vld [vmem:[%s5] sm:$0xff]
      %v901 = vld [vmem:[%s5 + $0x8] sm:$0xff]
      %903 = vset.pattern.permute.xlu0 0
      %904 = vperm.xlu0 %903, %v900
      %v905 = vpop.permute.xlu0 %904
      %908 = vset.pattern.permute.xlu0 0
      %909 = vperm.xlu0 %908, %v901
      %v910 = vpop.permute.xlu0 %909
      %v914 = vunpack.c.l.b16 %v898
      %v915 = vunpack.c.l.b16 %v899
      %v916 = vpack.c.b16 %v915, %v914
      %918 = vmatprep.subr.bf16.mxu0 %v897
      %919 = vmatpush1.bf16.msra.mxu0 %v896
      %920 = vmatprep.subr.bf16.mxu0 %v895
      %921 = vmatpush1.bf16.msra.mxu0 %v894
      %922 = vmatprep.subr.bf16.mxu0 %v893
      %923 = vmatpush1.bf16.msra.mxu0 %v892
      %924 = vmatprep.subr.bf16.mxu0 %v891
      %925 = vmatpush1.bf16.msra.mxu0 %v890
      %926 = vmatprep.subr.bf16.mxu0 %v889
      %927 = vmatpush1.bf16.msra.mxu0 %v888
      %928 = vmatprep.subr.bf16.mxu0 %v887
      %929 = vmatpush1.bf16.msra.mxu0 %v886
      %930 = vmatprep.subr.bf16.mxu0 %v885
      %931 = vmatpush1.bf16.msra.mxu0 %v884
      %932 = vmatprep.subr.bf16.mxu0 %v883
      %933 = vmatpush1.bf16.msra.mxu0 %v882
      %934 = vmatprep.subr.bf16.mxu0 0
      %935 = vmatpush2.bf16.msra.mxu0 0
      %936 = vmatprep.subr.bf16.mxu0 0
      %937 = vmatpush2.bf16.msra.mxu0 0
      %938 = vmatprep.subr.bf16.mxu0 0
      %939 = vmatpush2.bf16.msra.mxu0 0
      %940 = vmatprep.subr.bf16.mxu0 0
      %941 = vmatpush2.bf16.msra.mxu0 0
      %942 = vmatprep.subr.bf16.mxu0 0
      %943 = vmatpush2.bf16.msra.mxu0 0
      %944 = vmatprep.subr.bf16.mxu0 0
      %945 = vmatpush2.bf16.msra.mxu0 0
      %946 = vmatprep.subr.bf16.mxu0 0
      %947 = vmatpush2.bf16.msra.mxu0 0
      %948 = vmatprep.subr.bf16.mxu0 0
      %949 = vmatpush2.bf16.msra.mxu0 0
      %950 = vmatprep.mubr.bf16.mxu0 0
      %951 = vmatmul.mubr.bf16.gmra.mxu0 %v916
      %v952 = vpop.f32.mrf.mxu0
      %v953 = vadd.f32 %v905, %v952
      %v954 = vpop.f32.mrf.mxu0
      %v955 = vadd.f32 %v905, %v954
      %v956 = vpop.f32.mrf.mxu0
      %v957 = vadd.f32 %v910, %v956
      %v958 = vpop.f32.mrf.mxu0
      %v959 = vadd.f32 %v910, %v958
      %960 = vdwg.mxu0
      %v961 = vpack.c.bf16 %v957, %v953
      %v962 = vpack.c.bf16 %v959, %v955
      %v963 = vld [vmem:[#allocation2] sm:$0xff]
      %v964 = vld [vmem:[#allocation2 + $0x8] sm:$0xff]
      %v967 = vunpack.c.l.b16 %v963
      %v968 = vunpack.c.h.b16 %v963
      %v969 = vunpack.c.l.b16 %v964
      %v970 = vunpack.c.h.b16 %v964
      %v971 = vpack.c.b16 %v969, %v967
      %v972 = vpack.c.b16 %v970, %v968
      %975 = vxpose.xlu0.c.b16.start [1/8] %v971, 128
      %976 = vxpose.xlu0.c.b16.cont [2/8] 0, 128
      %977 = vxpose.xlu0.c.b16.cont [3/8] 0, 128
      %978 = vxpose.xlu0.c.b16.cont [4/8] 0, 128
      %979 = vxpose.xlu0.c.b16.cont [5/8] 0, 128
      %980 = vxpose.xlu0.c.b16.cont [6/8] 0, 128
      %981 = vxpose.xlu0.c.b16.cont [7/8] 0, 128
      %982 = vxpose.xlu0.c.b16.end [8/8] 0, 128
      %v983 = vpop.trf.xlu0
      %v984 = vpop.trf.xlu0
      %v985 = vpop.trf.xlu0
      %v986 = vpop.trf.xlu0
      %v987 = vpop.trf.xlu0
      %v988 = vpop.trf.xlu0
      %v989 = vpop.trf.xlu0
      %v990 = vpop.trf.xlu0
      %991 = vxpose.xlu0.c.b16.start [1/8] %v972, 128
      %992 = vxpose.xlu0.c.b16.cont [2/8] 0, 128
      %993 = vxpose.xlu0.c.b16.cont [3/8] 0, 128
      %994 = vxpose.xlu0.c.b16.cont [4/8] 0, 128
      %995 = vxpose.xlu0.c.b16.cont [5/8] 0, 128
      %996 = vxpose.xlu0.c.b16.cont [6/8] 0, 128
      %997 = vxpose.xlu0.c.b16.cont [7/8] 0, 128
      %998 = vxpose.xlu0.c.b16.end [8/8] 0, 128
      %v999 = vpop.trf.xlu0
      %v1000 = vpop.trf.xlu0
      %v1001 = vpop.trf.xlu0
      %v1002 = vpop.trf.xlu0
      %v1003 = vpop.trf.xlu0
      %v1004 = vpop.trf.xlu0
      %v1005 = vpop.trf.xlu0
      %v1006 = vpop.trf.xlu0
      %vm1007 = vcmask 130048
      %v1009 = vsel %vm1007, %v983, 0
      %v1012 = vsel %vm1007, %v984, 0
      %v1015 = vsel %vm1007, %v985, 0
      %v1018 = vsel %vm1007, %v986, 0
      %v1021 = vsel %vm1007, %v987, 0
      %v1024 = vsel %vm1007, %v988, 0
      %v1027 = vsel %vm1007, %v989, 0
      %v1030 = vsel %vm1007, %v990, 0
      %v1033 = vsel %vm1007, %v999, 0
      %v1036 = vsel %vm1007, %v1000, 0
      %v1039 = vsel %vm1007, %v1001, 0
      %v1042 = vsel %vm1007, %v1002, 0
      %v1045 = vsel %vm1007, %v1003, 0
      %v1048 = vsel %vm1007, %v1004, 0
      %v1051 = vsel %vm1007, %v1005, 0
      %v1054 = vsel %vm1007, %v1006, 0
      %1056 = vmatprep.subr.bf16.mxu0 0
      %1057 = vmatpush1.bf16.msra.mxu0 0
      %1058 = vmatprep.subr.bf16.mxu0 0
      %1059 = vmatpush1.bf16.msra.mxu0 0
      %1060 = vmatprep.subr.bf16.mxu0 0
      %1061 = vmatpush1.bf16.msra.mxu0 0
      %1062 = vmatprep.subr.bf16.mxu0 0
      %1063 = vmatpush1.bf16.msra.mxu0 0
      %1064 = vmatprep.subr.bf16.mxu0 0
      %1065 = vmatpush1.bf16.msra.mxu0 0
      %1066 = vmatprep.subr.bf16.mxu0 0
      %1067 = vmatpush1.bf16.msra.mxu0 0
      %1068 = vmatprep.subr.bf16.mxu0 0
      %1069 = vmatpush1.bf16.msra.mxu0 0
      %1070 = vmatprep.subr.bf16.mxu0 %v962
      %1071 = vmatpush1.bf16.msra.mxu0 %v961
      %1072 = vmatprep.subr.bf16.mxu0 0
      %1073 = vmatpush2.bf16.msra.mxu0 0
      %1074 = vmatprep.subr.bf16.mxu0 0
      %1075 = vmatpush2.bf16.msra.mxu0 0
      %1076 = vmatprep.subr.bf16.mxu0 0
      %1077 = vmatpush2.bf16.msra.mxu0 0
      %1078 = vmatprep.subr.bf16.mxu0 0
      %1079 = vmatpush2.bf16.msra.mxu0 0
      %1080 = vmatprep.subr.bf16.mxu0 0
      %1081 = vmatpush2.bf16.msra.mxu0 0
      %1082 = vmatprep.subr.bf16.mxu0 0
      %1083 = vmatpush2.bf16.msra.mxu0 0
      %1084 = vmatprep.subr.bf16.mxu0 0
      %1085 = vmatpush2.bf16.msra.mxu0 0
      %1086 = vmatprep.subr.bf16.mxu0 0
      %1087 = vmatpush2.bf16.msra.mxu0 0
      %1088 = vmatprep.mubr.bf16.mxu0 0
      %1089 = vmatmul.mubr.bf16.gmra.mxu0 %v1009
      %v1090 = vpop.f32.mrf.mxu0
      %v1091 = vadd.f32 0.0, %v1090
      %v1092 = vpop.f32.mrf.mxu0
      %v1093 = vadd.f32 0.0, %v1092
      %v1094 = vpop.f32.mrf.mxu0
      %v1095 = vadd.f32 0.0, %v1094
      %v1096 = vpop.f32.mrf.mxu0
      %v1097 = vadd.f32 0.0, %v1096
      %1098 = vmatprep.mubr.bf16.mxu0 0
      %1099 = vmatmul.mubr.bf16.gmra.mxu0 %v1012
      %v1100 = vpop.f32.mrf.mxu0
      %v1101 = vadd.f32 0.0, %v1100
      %v1102 = vpop.f32.mrf.mxu0
      %v1103 = vadd.f32 0.0, %v1102
      %v1104 = vpop.f32.mrf.mxu0
      %v1105 = vadd.f32 0.0, %v1104
      %v1106 = vpop.f32.mrf.mxu0
      %v1107 = vadd.f32 0.0, %v1106
      %1108 = vmatprep.mubr.bf16.mxu0 0
      %1109 = vmatmul.mubr.bf16.gmra.mxu0 %v1015
      %v1110 = vpop.f32.mrf.mxu0
      %v1111 = vadd.f32 0.0, %v1110
      %v1112 = vpop.f32.mrf.mxu0
      %v1113 = vadd.f32 0.0, %v1112
      %v1114 = vpop.f32.mrf.mxu0
      %v1115 = vadd.f32 0.0, %v1114
      %v1116 = vpop.f32.mrf.mxu0
      %v1117 = vadd.f32 0.0, %v1116
      %1118 = vmatprep.mubr.bf16.mxu0 0
      %1119 = vmatmul.mubr.bf16.gmra.mxu0 %v1018
      %v1120 = vpop.f32.mrf.mxu0
      %v1121 = vadd.f32 0.0, %v1120
      %v1122 = vpop.f32.mrf.mxu0
      %v1123 = vadd.f32 0.0, %v1122
      %v1124 = vpop.f32.mrf.mxu0
      %v1125 = vadd.f32 0.0, %v1124
      %v1126 = vpop.f32.mrf.mxu0
      %v1127 = vadd.f32 0.0, %v1126
      %1128 = vmatprep.mubr.bf16.mxu0 0
      %1129 = vmatmul.mubr.bf16.gmra.mxu0 %v1021
      %v1130 = vpop.f32.mrf.mxu0
      %v1131 = vadd.f32 0.0, %v1130
      %v1132 = vpop.f32.mrf.mxu0
      %v1133 = vadd.f32 0.0, %v1132
      %v1134 = vpop.f32.mrf.mxu0
      %v1135 = vadd.f32 0.0, %v1134
      %v1136 = vpop.f32.mrf.mxu0
      %v1137 = vadd.f32 0.0, %v1136
      %1138 = vmatprep.mubr.bf16.mxu0 0
      %1139 = vmatmul.mubr.bf16.gmra.mxu0 %v1024
      %v1140 = vpop.f32.mrf.mxu0
      %v1141 = vadd.f32 0.0, %v1140
      %v1142 = vpop.f32.mrf.mxu0
      %v1143 = vadd.f32 0.0, %v1142
      %v1144 = vpop.f32.mrf.mxu0
      %v1145 = vadd.f32 0.0, %v1144
      %v1146 = vpop.f32.mrf.mxu0
      %v1147 = vadd.f32 0.0, %v1146
      %1148 = vmatprep.mubr.bf16.mxu0 0
      %1149 = vmatmul.mubr.bf16.gmra.mxu0 %v1027
      %v1150 = vpop.f32.mrf.mxu0
      %v1151 = vadd.f32 0.0, %v1150
      %v1152 = vpop.f32.mrf.mxu0
      %v1153 = vadd.f32 0.0, %v1152
      %v1154 = vpop.f32.mrf.mxu0
      %v1155 = vadd.f32 0.0, %v1154
      %v1156 = vpop.f32.mrf.mxu0
      %v1157 = vadd.f32 0.0, %v1156
      %1158 = vmatprep.mubr.bf16.mxu0 0
      %1159 = vmatmul.mubr.bf16.gmra.mxu0 %v1030
      %v1160 = vpop.f32.mrf.mxu0
      %v1161 = vadd.f32 0.0, %v1160
      %v1162 = vpop.f32.mrf.mxu0
      %v1163 = vadd.f32 0.0, %v1162
      %v1164 = vpop.f32.mrf.mxu0
      %v1165 = vadd.f32 0.0, %v1164
      %v1166 = vpop.f32.mrf.mxu0
      %v1167 = vadd.f32 0.0, %v1166
      %1168 = vmatprep.mubr.bf16.mxu0 0
      %1169 = vmatmul.mubr.bf16.gmra.mxu0 %v1033
      %v1170 = vpop.f32.mrf.mxu0
      %v1171 = vadd.f32 0.0, %v1170
      %v1172 = vpop.f32.mrf.mxu0
      %v1173 = vadd.f32 0.0, %v1172
      %v1174 = vpop.f32.mrf.mxu0
      %v1175 = vadd.f32 0.0, %v1174
      %v1176 = vpop.f32.mrf.mxu0
      %v1177 = vadd.f32 0.0, %v1176
      %1178 = vmatprep.mubr.bf16.mxu0 0
      %1179 = vmatmul.mubr.bf16.gmra.mxu0 %v1036
      %v1180 = vpop.f32.mrf.mxu0
      %v1181 = vadd.f32 0.0, %v1180
      %v1182 = vpop.f32.mrf.mxu0
      %v1183 = vadd.f32 0.0, %v1182
      %v1184 = vpop.f32.mrf.mxu0
      %v1185 = vadd.f32 0.0, %v1184
      %v1186 = vpop.f32.mrf.mxu0
      %v1187 = vadd.f32 0.0, %v1186
      %1188 = vmatprep.mubr.bf16.mxu0 0
      %1189 = vmatmul.mubr.bf16.gmra.mxu0 %v1039
      %v1190 = vpop.f32.mrf.mxu0
      %v1191 = vadd.f32 0.0, %v1190
      %v1192 = vpop.f32.mrf.mxu0
      %v1193 = vadd.f32 0.0, %v1192
      %v1194 = vpop.f32.mrf.mxu0
      %v1195 = vadd.f32 0.0, %v1194
      %v1196 = vpop.f32.mrf.mxu0
      %v1197 = vadd.f32 0.0, %v1196
      %1198 = vmatprep.mubr.bf16.mxu0 0
      %1199 = vmatmul.mubr.bf16.gmra.mxu0 %v1042
      %v1200 = vpop.f32.mrf.mxu0
      %v1201 = vadd.f32 0.0, %v1200
      %v1202 = vpop.f32.mrf.mxu0
      %v1203 = vadd.f32 0.0, %v1202
      %v1204 = vpop.f32.mrf.mxu0
      %v1205 = vadd.f32 0.0, %v1204
      %v1206 = vpop.f32.mrf.mxu0
      %v1207 = vadd.f32 0.0, %v1206
      %1208 = vmatprep.mubr.bf16.mxu0 0
      %1209 = vmatmul.mubr.bf16.gmra.mxu0 %v1045
      %v1210 = vpop.f32.mrf.mxu0
      %v1211 = vadd.f32 0.0, %v1210
      %v1212 = vpop.f32.mrf.mxu0
      %v1213 = vadd.f32 0.0, %v1212
      %v1214 = vpop.f32.mrf.mxu0
      %v1215 = vadd.f32 0.0, %v1214
      %v1216 = vpop.f32.mrf.mxu0
      %v1217 = vadd.f32 0.0, %v1216
      %1218 = vmatprep.mubr.bf16.mxu0 0
      %1219 = vmatmul.mubr.bf16.gmra.mxu0 %v1048
      %v1220 = vpop.f32.mrf.mxu0
      %v1221 = vadd.f32 0.0, %v1220
      %v1222 = vpop.f32.mrf.mxu0
      %v1223 = vadd.f32 0.0, %v1222
      %v1224 = vpop.f32.mrf.mxu0
      %v1225 = vadd.f32 0.0, %v1224
      %v1226 = vpop.f32.mrf.mxu0
      %v1227 = vadd.f32 0.0, %v1226
      %1228 = vmatprep.mubr.bf16.mxu0 0
      %1229 = vmatmul.mubr.bf16.gmra.mxu0 %v1051
      %v1230 = vpop.f32.mrf.mxu0
      %v1231 = vadd.f32 0.0, %v1230
      %v1232 = vpop.f32.mrf.mxu0
      %v1233 = vadd.f32 0.0, %v1232
      %v1234 = vpop.f32.mrf.mxu0
      %v1235 = vadd.f32 0.0, %v1234
      %v1236 = vpop.f32.mrf.mxu0
      %v1237 = vadd.f32 0.0, %v1236
      %1238 = vmatprep.mubr.bf16.mxu0 0
      %1239 = vmatmul.mubr.bf16.gmra.mxu0 %v1054
      %v1240 = vpop.f32.mrf.mxu0
      %v1241 = vadd.f32 0.0, %v1240
      %v1242 = vpop.f32.mrf.mxu0
      %v1243 = vadd.f32 0.0, %v1242
      %v1244 = vpop.f32.mrf.mxu0
      %v1245 = vadd.f32 0.0, %v1244
      %v1246 = vpop.f32.mrf.mxu0
      %v1247 = vadd.f32 0.0, %v1246
      %1248 = vdwg.mxu0
      %v1249 = vmax.f32 %v1091, %v1101
      %v1250 = vmax.f32 %v1095, %v1105
      %v1251 = vmax.f32 %v1249, %v1111
      %v1252 = vmax.f32 %v1250, %v1115
      %v1253 = vmax.f32 %v1251, %v1121
      %v1254 = vmax.f32 %v1252, %v1125
      %v1255 = vmax.f32 %v1253, %v1131
      %v1256 = vmax.f32 %v1254, %v1135
      %v1257 = vmax.f32 %v1255, %v1141
      %v1258 = vmax.f32 %v1256, %v1145
      %v1259 = vmax.f32 %v1257, %v1151
      %v1260 = vmax.f32 %v1258, %v1155
      %v1261 = vmax.f32 %v1259, %v1161
      %v1262 = vmax.f32 %v1260, %v1165
      %v1263 = vmax.f32 %v1261, %v1171
      %v1264 = vmax.f32 %v1262, %v1175
      %v1265 = vmax.f32 %v1263, %v1181
      %v1266 = vmax.f32 %v1264, %v1185
      %v1267 = vmax.f32 %v1265, %v1191
      %v1268 = vmax.f32 %v1266, %v1195
      %v1269 = vmax.f32 %v1267, %v1201
      %v1270 = vmax.f32 %v1268, %v1205
      %v1271 = vmax.f32 %v1269, %v1211
      %v1272 = vmax.f32 %v1270, %v1215
      %v1273 = vmax.f32 %v1271, %v1221
      %v1274 = vmax.f32 %v1272, %v1225
      %v1275 = vmax.f32 %v1273, %v1231
      %v1276 = vmax.f32 %v1274, %v1235
      %v1277 = vmax.f32 %v1275, %v1241
      %v1278 = vmax.f32 %v1276, %v1245
      %v1279 = vmax.f32 %v1277, %v1278
      %v1280 = vrot.slane %v1279, 4
      %v1281 = vmax.f32 %v1279, %v1280
      %v1282 = vrot.slane %v1281, 2
      %v1283 = vmax.f32 %v1281, %v1282
      %v1284 = vrot.slane %v1283, 1
      %v1285 = vmax.f32 %v1283, %v1284
      %v1286 = vmax.f32 %v1093, %v1103
      %v1287 = vmax.f32 %v1097, %v1107
      %v1288 = vmax.f32 %v1286, %v1113
      %v1289 = vmax.f32 %v1287, %v1117
      %v1290 = vmax.f32 %v1288, %v1123
      %v1291 = vmax.f32 %v1289, %v1127
      %v1292 = vmax.f32 %v1290, %v1133
      %v1293 = vmax.f32 %v1291, %v1137
      %v1294 = vmax.f32 %v1292, %v1143
      %v1295 = vmax.f32 %v1293, %v1147
      %v1296 = vmax.f32 %v1294, %v1153
      %v1297 = vmax.f32 %v1295, %v1157
      %v1298 = vmax.f32 %v1296, %v1163
      %v1299 = vmax.f32 %v1297, %v1167
      %v1300 = vmax.f32 %v1298, %v1173
      %v1301 = vmax.f32 %v1299, %v1177
      %v1302 = vmax.f32 %v1300, %v1183
      %v1303 = vmax.f32 %v1301, %v1187
      %v1304 = vmax.f32 %v1302, %v1193
      %v1305 = vmax.f32 %v1303, %v1197
      %v1306 = vmax.f32 %v1304, %v1203
      %v1307 = vmax.f32 %v1305, %v1207
      %v1308 = vmax.f32 %v1306, %v1213
      %v1309 = vmax.f32 %v1307, %v1217
      %v1310 = vmax.f32 %v1308, %v1223
      %v1311 = vmax.f32 %v1309, %v1227
      %v1312 = vmax.f32 %v1310, %v1233
      %v1313 = vmax.f32 %v1311, %v1237
      %v1314 = vmax.f32 %v1312, %v1243
      %v1315 = vmax.f32 %v1313, %v1247
      %v1316 = vmax.f32 %v1314, %v1315
      %v1317 = vrot.slane %v1316, 4
      %v1318 = vmax.f32 %v1316, %v1317
      %v1319 = vrot.slane %v1318, 2
      %v1320 = vmax.f32 %v1318, %v1319
      %v1321 = vrot.slane %v1320, 1
      %v1322 = vmax.f32 %v1320, %v1321
      %v1323 = vsub.f32 %v1091, %v1285
      %v1324 = vsub.f32 %v1093, %v1322
      %v1325 = vsub.f32 %v1095, %v1285
      %v1326 = vsub.f32 %v1097, %v1322
      %v1327 = vsub.f32 %v1101, %v1285
      %v1328 = vsub.f32 %v1103, %v1322
      %v1329 = vsub.f32 %v1105, %v1285
      %v1330 = vsub.f32 %v1107, %v1322
      %v1331 = vsub.f32 %v1111, %v1285
      %v1332 = vsub.f32 %v1113, %v1322
      %v1333 = vsub.f32 %v1115, %v1285
      %v1334 = vsub.f32 %v1117, %v1322
      %v1335 = vsub.f32 %v1121, %v1285
      %v1336 = vsub.f32 %v1123, %v1322
      %v1337 = vsub.f32 %v1125, %v1285
      %v1338 = vsub.f32 %v1127, %v1322
      %v1339 = vsub.f32 %v1131, %v1285
      %v1340 = vsub.f32 %v1133, %v1322
      %v1341 = vsub.f32 %v1135, %v1285
      %v1342 = vsub.f32 %v1137, %v1322
      %v1343 = vsub.f32 %v1141, %v1285
      %v1344 = vsub.f32 %v1143, %v1322
      %v1345 = vsub.f32 %v1145, %v1285
      %v1346 = vsub.f32 %v1147, %v1322
      %v1347 = vsub.f32 %v1151, %v1285
      %v1348 = vsub.f32 %v1153, %v1322
      %v1349 = vsub.f32 %v1155, %v1285
      %v1350 = vsub.f32 %v1157, %v1322
      %v1351 = vsub.f32 %v1161, %v1285
      %v1352 = vsub.f32 %v1163, %v1322
      %v1353 = vsub.f32 %v1165, %v1285
      %v1354 = vsub.f32 %v1167, %v1322
      %v1355 = vsub.f32 %v1171, %v1285
      %v1356 = vsub.f32 %v1173, %v1322
      %v1357 = vsub.f32 %v1175, %v1285
      %v1358 = vsub.f32 %v1177, %v1322
      %v1359 = vsub.f32 %v1181, %v1285
      %v1360 = vsub.f32 %v1183, %v1322
      %v1361 = vsub.f32 %v1185, %v1285
      %v1362 = vsub.f32 %v1187, %v1322
      %v1363 = vsub.f32 %v1191, %v1285
      %v1364 = vsub.f32 %v1193, %v1322
      %v1365 = vsub.f32 %v1195, %v1285
      %v1366 = vsub.f32 %v1197, %v1322
      %v1367 = vsub.f32 %v1201, %v1285
      %v1368 = vsub.f32 %v1203, %v1322
      %v1369 = vsub.f32 %v1205, %v1285
      %v1370 = vsub.f32 %v1207, %v1322
      %v1371 = vsub.f32 %v1211, %v1285
      %v1372 = vsub.f32 %v1213, %v1322
      %v1373 = vsub.f32 %v1215, %v1285
      %v1374 = vsub.f32 %v1217, %v1322
      %v1375 = vsub.f32 %v1221, %v1285
      %v1376 = vsub.f32 %v1223, %v1322
      %v1377 = vsub.f32 %v1225, %v1285
      %v1378 = vsub.f32 %v1227, %v1322
      %v1379 = vsub.f32 %v1231, %v1285
      %v1380 = vsub.f32 %v1233, %v1322
      %v1381 = vsub.f32 %v1235, %v1285
      %v1382 = vsub.f32 %v1237, %v1322
      %v1383 = vsub.f32 %v1241, %v1285
      %v1384 = vsub.f32 %v1243, %v1322
      %v1385 = vsub.f32 %v1245, %v1285
      %v1386 = vsub.f32 %v1247, %v1322
      %v1387 = vmul.f32 %v1323, 1.442695
      %v1388 = vpow.pop %v1387
      %v1389 = vmul.f32 %v1324, 1.442695
      %v1390 = vpow.pop %v1389
      %v1391 = vmul.f32 %v1325, 1.442695
      %v1392 = vpow.pop %v1391
      %v1393 = vmul.f32 %v1326, 1.442695
      %v1394 = vpow.pop %v1393
      %v1395 = vmul.f32 %v1327, 1.442695
      %v1396 = vpow.pop %v1395
      %v1397 = vmul.f32 %v1328, 1.442695
      %v1398 = vpow.pop %v1397
      %v1399 = vmul.f32 %v1329, 1.442695
      %v1400 = vpow.pop %v1399
      %v1401 = vmul.f32 %v1330, 1.442695
      %v1402 = vpow.pop %v1401
      %v1403 = vmul.f32 %v1331, 1.442695
      %v1404 = vpow.pop %v1403
      %v1405 = vmul.f32 %v1332, 1.442695
      %v1406 = vpow.pop %v1405
      %v1407 = vmul.f32 %v1333, 1.442695
      %v1408 = vpow.pop %v1407
      %v1409 = vmul.f32 %v1334, 1.442695
      %v1410 = vpow.pop %v1409
      %v1411 = vmul.f32 %v1335, 1.442695
      %v1412 = vpow.pop %v1411
      %v1413 = vmul.f32 %v1336, 1.442695
      %v1414 = vpow.pop %v1413
      %v1415 = vmul.f32 %v1337, 1.442695
      %v1416 = vpow.pop %v1415
      %v1417 = vmul.f32 %v1338, 1.442695
      %v1418 = vpow.pop %v1417
      %v1419 = vmul.f32 %v1339, 1.442695
      %v1420 = vpow.pop %v1419
      %v1421 = vmul.f32 %v1340, 1.442695
      %v1422 = vpow.pop %v1421
      %v1423 = vmul.f32 %v1341, 1.442695
      %v1424 = vpow.pop %v1423
      %v1425 = vmul.f32 %v1342, 1.442695
      %v1426 = vpow.pop %v1425
      %v1427 = vmul.f32 %v1343, 1.442695
      %v1428 = vpow.pop %v1427
      %v1429 = vmul.f32 %v1344, 1.442695
      %v1430 = vpow.pop %v1429
      %v1431 = vmul.f32 %v1345, 1.442695
      %v1432 = vpow.pop %v1431
      %v1433 = vmul.f32 %v1346, 1.442695
      %v1434 = vpow.pop %v1433
      %v1435 = vmul.f32 %v1347, 1.442695
      %v1436 = vpow.pop %v1435
      %v1437 = vmul.f32 %v1348, 1.442695
      %v1438 = vpow.pop %v1437
      %v1439 = vmul.f32 %v1349, 1.442695
      %v1440 = vpow.pop %v1439
      %v1441 = vmul.f32 %v1350, 1.442695
      %v1442 = vpow.pop %v1441
      %v1443 = vmul.f32 %v1351, 1.442695
      %v1444 = vpow.pop %v1443
      %v1445 = vmul.f32 %v1352, 1.442695
      %v1446 = vpow.pop %v1445
      %v1447 = vmul.f32 %v1353, 1.442695
      %v1448 = vpow.pop %v1447
      %v1449 = vmul.f32 %v1354, 1.442695
      %v1450 = vpow.pop %v1449
      %v1451 = vmul.f32 %v1355, 1.442695
      %v1452 = vpow.pop %v1451
      %v1453 = vmul.f32 %v1356, 1.442695
      %v1454 = vpow.pop %v1453
      %v1455 = vmul.f32 %v1357, 1.442695
      %v1456 = vpow.pop %v1455
      %v1457 = vmul.f32 %v1358, 1.442695
      %v1458 = vpow.pop %v1457
      %v1459 = vmul.f32 %v1359, 1.442695
      %v1460 = vpow.pop %v1459
      %v1461 = vmul.f32 %v1360, 1.442695
      %v1462 = vpow.pop %v1461
      %v1463 = vmul.f32 %v1361, 1.442695
      %v1464 = vpow.pop %v1463
      %v1465 = vmul.f32 %v1362, 1.442695
      %v1466 = vpow.pop %v1465
      %v1467 = vmul.f32 %v1363, 1.442695
      %v1468 = vpow.pop %v1467
      %v1469 = vmul.f32 %v1364, 1.442695
      %v1470 = vpow.pop %v1469
      %v1471 = vmul.f32 %v1365, 1.442695
      %v1472 = vpow.pop %v1471
      %v1473 = vmul.f32 %v1366, 1.442695
      %v1474 = vpow.pop %v1473
      %v1475 = vmul.f32 %v1367, 1.442695
      %v1476 = vpow.pop %v1475
      %v1477 = vmul.f32 %v1368, 1.442695
      %v1478 = vpow.pop %v1477
      %v1479 = vmul.f32 %v1369, 1.442695
      %v1480 = vpow.pop %v1479
      %v1481 = vmul.f32 %v1370, 1.442695
      %v1482 = vpow.pop %v1481
      %v1483 = vmul.f32 %v1371, 1.442695
      %v1484 = vpow.pop %v1483
      %v1485 = vmul.f32 %v1372, 1.442695
      %v1486 = vpow.pop %v1485
      %v1487 = vmul.f32 %v1373, 1.442695
      %v1488 = vpow.pop %v1487
      %v1489 = vmul.f32 %v1374, 1.442695
      %v1490 = vpow.pop %v1489
      %v1491 = vmul.f32 %v1375, 1.442695
      %v1492 = vpow.pop %v1491
      %v1493 = vmul.f32 %v1376, 1.442695
      %v1494 = vpow.pop %v1493
      %v1495 = vmul.f32 %v1377, 1.442695
      %v1496 = vpow.pop %v1495
      %v1497 = vmul.f32 %v1378, 1.442695
      %v1498 = vpow.pop %v1497
      %v1499 = vmul.f32 %v1379, 1.442695
      %v1500 = vpow.pop %v1499
      %v1501 = vmul.f32 %v1380, 1.442695
      %v1502 = vpow.pop %v1501
      %v1503 = vmul.f32 %v1381, 1.442695
      %v1504 = vpow.pop %v1503
      %v1505 = vmul.f32 %v1382, 1.442695
      %v1506 = vpow.pop %v1505
      %v1507 = vmul.f32 %v1383, 1.442695
      %v1508 = vpow.pop %v1507
      %v1509 = vmul.f32 %v1384, 1.442695
      %v1510 = vpow.pop %v1509
      %v1511 = vmul.f32 %v1385, 1.442695
      %v1512 = vpow.pop %v1511
      %v1513 = vmul.f32 %v1386, 1.442695
      %v1514 = vpow.pop %v1513
      %v1515 = vadd.f32 %v1388, %v1392
      %v1516 = vadd.f32 %v1515, %v1396
      %v1517 = vadd.f32 %v1516, %v1400
      %v1518 = vadd.f32 %v1517, %v1404
      %v1519 = vadd.f32 %v1518, %v1408
      %v1520 = vadd.f32 %v1519, %v1412
      %v1521 = vadd.f32 %v1520, %v1416
      %v1522 = vadd.f32 %v1521, %v1420
      %v1523 = vadd.f32 %v1522, %v1424
      %v1524 = vadd.f32 %v1523, %v1428
      %v1525 = vadd.f32 %v1524, %v1432
      %v1526 = vadd.f32 %v1525, %v1436
      %v1527 = vadd.f32 %v1526, %v1440
      %v1528 = vadd.f32 %v1527, %v1444
      %v1529 = vadd.f32 %v1528, %v1448
      %v1530 = vadd.f32 %v1529, %v1452
      %v1531 = vadd.f32 %v1530, %v1456
      %v1532 = vadd.f32 %v1531, %v1460
      %v1533 = vadd.f32 %v1532, %v1464
      %v1534 = vadd.f32 %v1533, %v1468
      %v1535 = vadd.f32 %v1534, %v1472
      %v1536 = vadd.f32 %v1535, %v1476
      %v1537 = vadd.f32 %v1536, %v1480
      %v1538 = vadd.f32 %v1537, %v1484
      %v1539 = vadd.f32 %v1538, %v1488
      %v1540 = vadd.f32 %v1539, %v1492
      %v1541 = vadd.f32 %v1540, %v1496
      %v1542 = vadd.f32 %v1541, %v1500
      %v1543 = vadd.f32 %v1542, %v1504
      %v1544 = vadd.f32 %v1543, %v1508
      %v1545 = vadd.f32 %v1544, %v1512
      %v1546 = vrot.slane %v1545, 4
      %v1547 = vadd.f32 %v1545, %v1546
      %v1548 = vrot.slane %v1547, 2
      %v1549 = vadd.f32 %v1547, %v1548
      %v1550 = vrot.slane %v1549, 1
      %v1551 = vadd.f32 %v1549, %v1550
      %v1552 = vadd.f32 %v1390, %v1394
      %v1553 = vadd.f32 %v1552, %v1398
      %v1554 = vadd.f32 %v1553, %v1402
      %v1555 = vadd.f32 %v1554, %v1406
      %v1556 = vadd.f32 %v1555, %v1410
      %v1557 = vadd.f32 %v1556, %v1414
      %v1558 = vadd.f32 %v1557, %v1418
      %v1559 = vadd.f32 %v1558, %v1422
      %v1560 = vadd.f32 %v1559, %v1426
      %v1561 = vadd.f32 %v1560, %v1430
      %v1562 = vadd.f32 %v1561, %v1434
      %v1563 = vadd.f32 %v1562, %v1438
      %v1564 = vadd.f32 %v1563, %v1442
      %v1565 = vadd.f32 %v1564, %v1446
      %v1566 = vadd.f32 %v1565, %v1450
      %v1567 = vadd.f32 %v1566, %v1454
      %v1568 = vadd.f32 %v1567, %v1458
      %v1569 = vadd.f32 %v1568, %v1462
      %v1570 = vadd.f32 %v1569, %v1466
      %v1571 = vadd.f32 %v1570, %v1470
      %v1572 = vadd.f32 %v1571, %v1474
      %v1573 = vadd.f32 %v1572, %v1478
      %v1574 = vadd.f32 %v1573, %v1482
      %v1575 = vadd.f32 %v1574, %v1486
      %v1576 = vadd.f32 %v1575, %v1490
      %v1577 = vadd.f32 %v1576, %v1494
      %v1578 = vadd.f32 %v1577, %v1498
      %v1579 = vadd.f32 %v1578, %v1502
      %v1580 = vadd.f32 %v1579, %v1506
      %v1581 = vadd.f32 %v1580, %v1510
      %v1582 = vadd.f32 %v1581, %v1514
      %v1583 = vrot.slane %v1582, 4
      %v1584 = vadd.f32 %v1582, %v1583
      %v1585 = vrot.slane %v1584, 2
      %v1586 = vadd.f32 %v1584, %v1585
      %v1587 = vrot.slane %v1586, 1
      %v1588 = vadd.f32 %v1586, %v1587
      %v1589 = vpack.c.bf16 %v1392, %v1388
      %v1590 = vpack.c.bf16 %v1394, %v1390
      %v1591 = vpack.c.bf16 %v1400, %v1396
      %v1592 = vpack.c.bf16 %v1402, %v1398
      %v1593 = vpack.c.bf16 %v1408, %v1404
      %v1594 = vpack.c.bf16 %v1410, %v1406
      %v1595 = vpack.c.bf16 %v1416, %v1412
      %v1596 = vpack.c.bf16 %v1418, %v1414
      %v1597 = vpack.c.bf16 %v1424, %v1420
      %v1598 = vpack.c.bf16 %v1426, %v1422
      %v1599 = vpack.c.bf16 %v1432, %v1428
      %v1600 = vpack.c.bf16 %v1434, %v1430
      %v1601 = vpack.c.bf16 %v1440, %v1436
      %v1602 = vpack.c.bf16 %v1442, %v1438
      %v1603 = vpack.c.bf16 %v1448, %v1444
      %v1604 = vpack.c.bf16 %v1450, %v1446
      %v1605 = vpack.c.bf16 %v1456, %v1452
      %v1606 = vpack.c.bf16 %v1458, %v1454
      %v1607 = vpack.c.bf16 %v1464, %v1460
      %v1608 = vpack.c.bf16 %v1466, %v1462
      %v1609 = vpack.c.bf16 %v1472, %v1468
      %v1610 = vpack.c.bf16 %v1474, %v1470
      %v1611 = vpack.c.bf16 %v1480, %v1476
      %v1612 = vpack.c.bf16 %v1482, %v1478
      %v1613 = vpack.c.bf16 %v1488, %v1484
      %v1614 = vpack.c.bf16 %v1490, %v1486
      %v1615 = vpack.c.bf16 %v1496, %v1492
      %v1616 = vpack.c.bf16 %v1498, %v1494
      %v1617 = vpack.c.bf16 %v1504, %v1500
      %v1618 = vpack.c.bf16 %v1506, %v1502
      %v1619 = vpack.c.bf16 %v1512, %v1508
      %v1620 = vpack.c.bf16 %v1514, %v1510
      %v1621 = vld [vmem:[#allocation3] sm:$0xff]
      %v1622 = vld [vmem:[#allocation3 + $0x8] sm:$0xff]
      %v1623 = vld [vmem:[#allocation3 + $0x10] sm:$0xff]
      %v1624 = vld [vmem:[#allocation3 + $0x18] sm:$0xff]
      %v1625 = vld [vmem:[#allocation3 + $0x20] sm:$0xff]
      %v1626 = vld [vmem:[#allocation3 + $0x28] sm:$0xff]
      %v1627 = vld [vmem:[#allocation3 + $0x30] sm:$0xff]
      %v1628 = vld [vmem:[#allocation3 + $0x38] sm:$0xff]
      %v1629 = vld [vmem:[#allocation3 + $0x40] sm:$0xff]
      %v1630 = vld [vmem:[#allocation3 + $0x48] sm:$0xff]
      %v1631 = vld [vmem:[#allocation3 + $0x50] sm:$0xff]
      %v1632 = vld [vmem:[#allocation3 + $0x58] sm:$0xff]
      %v1633 = vld [vmem:[#allocation3 + $0x60] sm:$0xff]
      %v1634 = vld [vmem:[#allocation3 + $0x68] sm:$0xff]
      %v1635 = vld [vmem:[#allocation3 + $0x70] sm:$0xff]
      %v1636 = vld [vmem:[#allocation3 + $0x78] sm:$0xff]
      %v1653 = vunpack.c.l.b16 %v1621
      %v1654 = vunpack.c.h.b16 %v1621
      %v1655 = vunpack.c.l.b16 %v1622
      %v1656 = vunpack.c.h.b16 %v1622
      %v1657 = vunpack.c.l.b16 %v1623
      %v1658 = vunpack.c.h.b16 %v1623
      %v1659 = vunpack.c.l.b16 %v1624
      %v1660 = vunpack.c.h.b16 %v1624
      %v1661 = vunpack.c.l.b16 %v1625
      %v1662 = vunpack.c.h.b16 %v1625
      %v1663 = vunpack.c.l.b16 %v1626
      %v1664 = vunpack.c.h.b16 %v1626
      %v1665 = vunpack.c.l.b16 %v1627
      %v1666 = vunpack.c.h.b16 %v1627
      %v1667 = vunpack.c.l.b16 %v1628
      %v1668 = vunpack.c.h.b16 %v1628
      %v1669 = vunpack.c.l.b16 %v1629
      %v1670 = vunpack.c.h.b16 %v1629
      %v1671 = vunpack.c.l.b16 %v1630
      %v1672 = vunpack.c.h.b16 %v1630
      %v1673 = vunpack.c.l.b16 %v1631
      %v1674 = vunpack.c.h.b16 %v1631
      %v1675 = vunpack.c.l.b16 %v1632
      %v1676 = vunpack.c.h.b16 %v1632
      %v1677 = vunpack.c.l.b16 %v1633
      %v1678 = vunpack.c.h.b16 %v1633
      %v1679 = vunpack.c.l.b16 %v1634
      %v1680 = vunpack.c.h.b16 %v1634
      %v1681 = vunpack.c.l.b16 %v1635
      %v1682 = vunpack.c.h.b16 %v1635
      %v1683 = vunpack.c.l.b16 %v1636
      %v1684 = vunpack.c.h.b16 %v1636
      %v1685 = vpack.c.b16 %v1655, %v1653
      %v1686 = vpack.c.b16 %v1656, %v1654
      %v1687 = vpack.c.b16 %v1659, %v1657
      %v1688 = vpack.c.b16 %v1660, %v1658
      %v1689 = vpack.c.b16 %v1663, %v1661
      %v1690 = vpack.c.b16 %v1664, %v1662
      %v1691 = vpack.c.b16 %v1667, %v1665
      %v1692 = vpack.c.b16 %v1668, %v1666
      %v1693 = vpack.c.b16 %v1671, %v1669
      %v1694 = vpack.c.b16 %v1672, %v1670
      %v1695 = vpack.c.b16 %v1675, %v1673
      %v1696 = vpack.c.b16 %v1676, %v1674
      %v1697 = vpack.c.b16 %v1679, %v1677
      %v1698 = vpack.c.b16 %v1680, %v1678
      %v1699 = vpack.c.b16 %v1683, %v1681
      %v1700 = vpack.c.b16 %v1684, %v1682
      %1717 = vmatprep.subr.bf16.mxu0 %v1604
      %1718 = vmatpush1.bf16.msra.mxu0 %v1603
      %1719 = vmatprep.subr.bf16.mxu0 %v1602
      %1720 = vmatpush1.bf16.msra.mxu0 %v1601
      %1721 = vmatprep.subr.bf16.mxu0 %v1600
      %1722 = vmatpush1.bf16.msra.mxu0 %v1599
      %1723 = vmatprep.subr.bf16.mxu0 %v1598
      %1724 = vmatpush1.bf16.msra.mxu0 %v1597
      %1725 = vmatprep.subr.bf16.mxu0 %v1596
      %1726 = vmatpush1.bf16.msra.mxu0 %v1595
      %1727 = vmatprep.subr.bf16.mxu0 %v1594
      %1728 = vmatpush1.bf16.msra.mxu0 %v1593
      %1729 = vmatprep.subr.bf16.mxu0 %v1592
      %1730 = vmatpush1.bf16.msra.mxu0 %v1591
      %1731 = vmatprep.subr.bf16.mxu0 %v1590
      %1732 = vmatpush1.bf16.msra.mxu0 %v1589
      %1733 = vmatprep.subr.bf16.mxu0 %v1620
      %1734 = vmatpush2.bf16.msra.mxu0 %v1619
      %1735 = vmatprep.subr.bf16.mxu0 %v1618
      %1736 = vmatpush2.bf16.msra.mxu0 %v1617
      %1737 = vmatprep.subr.bf16.mxu0 %v1616
      %1738 = vmatpush2.bf16.msra.mxu0 %v1615
      %1739 = vmatprep.subr.bf16.mxu0 %v1614
      %1740 = vmatpush2.bf16.msra.mxu0 %v1613
      %1741 = vmatprep.subr.bf16.mxu0 %v1612
      %1742 = vmatpush2.bf16.msra.mxu0 %v1611
      %1743 = vmatprep.subr.bf16.mxu0 %v1610
      %1744 = vmatpush2.bf16.msra.mxu0 %v1609
      %1745 = vmatprep.subr.bf16.mxu0 %v1608
      %1746 = vmatpush2.bf16.msra.mxu0 %v1607
      %1747 = vmatprep.subr.bf16.mxu0 %v1606
      %1748 = vmatpush2.bf16.msra.mxu0 %v1605
      %1749 = vmatprep.mubr.bf16.mxu0 %v1686
      %1750 = vmatmul.mubr.bf16.gmra.mxu0 %v1685
      %v1751 = vpop.f32.mrf.mxu0
      %v1752 = vadd.f32 0.0, %v1751
      %v1753 = vpop.f32.mrf.mxu0
      %v1754 = vadd.f32 0.0, %v1753
      %v1755 = vpop.f32.mrf.mxu0
      %v1756 = vadd.f32 0.0, %v1755
      %v1757 = vpop.f32.mrf.mxu0
      %v1758 = vadd.f32 0.0, %v1757
      %1759 = vmatprep.mubr.bf16.mxu0 %v1688
      %1760 = vmatmul.mubr.bf16.gmra.mxu0 %v1687
      %v1761 = vpop.f32.mrf.mxu0
      %v1762 = vadd.f32 0.0, %v1761
      %v1763 = vpop.f32.mrf.mxu0
      %v1764 = vadd.f32 0.0, %v1763
      %v1765 = vpop.f32.mrf.mxu0
      %v1766 = vadd.f32 0.0, %v1765
      %v1767 = vpop.f32.mrf.mxu0
      %v1768 = vadd.f32 0.0, %v1767
      %1769 = vmatprep.mubr.bf16.mxu0 %v1690
      %1770 = vmatmul.mubr.bf16.gmra.mxu0 %v1689
      %v1771 = vpop.f32.mrf.mxu0
      %v1772 = vadd.f32 0.0, %v1771
      %v1773 = vpop.f32.mrf.mxu0
      %v1774 = vadd.f32 0.0, %v1773
      %v1775 = vpop.f32.mrf.mxu0
      %v1776 = vadd.f32 0.0, %v1775
      %v1777 = vpop.f32.mrf.mxu0
      %v1778 = vadd.f32 0.0, %v1777
      %1779 = vmatprep.mubr.bf16.mxu0 %v1692
      %1780 = vmatmul.mubr.bf16.gmra.mxu0 %v1691
      %v1781 = vpop.f32.mrf.mxu0
      %v1782 = vadd.f32 0.0, %v1781
      %v1783 = vpop.f32.mrf.mxu0
      %v1784 = vadd.f32 0.0, %v1783
      %v1785 = vpop.f32.mrf.mxu0
      %v1786 = vadd.f32 0.0, %v1785
      %v1787 = vpop.f32.mrf.mxu0
      %v1788 = vadd.f32 0.0, %v1787
      %1789 = vmatprep.mubr.bf16.mxu0 %v1694
      %1790 = vmatmul.mubr.bf16.gmra.mxu0 %v1693
      %v1791 = vpop.f32.mrf.mxu0
      %v1792 = vadd.f32 0.0, %v1791
      %v1793 = vpop.f32.mrf.mxu0
      %v1794 = vadd.f32 0.0, %v1793
      %v1795 = vpop.f32.mrf.mxu0
      %v1796 = vadd.f32 0.0, %v1795
      %v1797 = vpop.f32.mrf.mxu0
      %v1798 = vadd.f32 0.0, %v1797
      %1799 = vmatprep.mubr.bf16.mxu0 %v1696
      %1800 = vmatmul.mubr.bf16.gmra.mxu0 %v1695
      %v1801 = vpop.f32.mrf.mxu0
      %v1802 = vadd.f32 0.0, %v1801
      %v1803 = vpop.f32.mrf.mxu0
      %v1804 = vadd.f32 0.0, %v1803
      %v1805 = vpop.f32.mrf.mxu0
      %v1806 = vadd.f32 0.0, %v1805
      %v1807 = vpop.f32.mrf.mxu0
      %v1808 = vadd.f32 0.0, %v1807
      %1809 = vmatprep.mubr.bf16.mxu0 %v1698
      %1810 = vmatmul.mubr.bf16.gmra.mxu0 %v1697
      %v1811 = vpop.f32.mrf.mxu0
      %v1812 = vadd.f32 0.0, %v1811
      %v1813 = vpop.f32.mrf.mxu0
      %v1814 = vadd.f32 0.0, %v1813
      %v1815 = vpop.f32.mrf.mxu0
      %v1816 = vadd.f32 0.0, %v1815
      %v1817 = vpop.f32.mrf.mxu0
      %v1818 = vadd.f32 0.0, %v1817
      %1819 = vmatprep.mubr.bf16.mxu0 %v1700
      %1820 = vmatmul.mubr.bf16.gmra.mxu0 %v1699
      %v1821 = vpop.f32.mrf.mxu0
      %v1822 = vadd.f32 0.0, %v1821
      %v1823 = vpop.f32.mrf.mxu0
      %v1824 = vadd.f32 0.0, %v1823
      %v1825 = vpop.f32.mrf.mxu0
      %v1826 = vadd.f32 0.0, %v1825
      %v1827 = vpop.f32.mrf.mxu0
      %v1828 = vadd.f32 0.0, %v1827
      %1829 = vdwg.mxu0
      %s1830 = sld [smem:[#allocation4]]
      %v1831 = vrcp.pop %v1551
      %v1832 = vrcp.pop %v1588
      %v1833 = vstv %s1830
      %v1834 = vmul.f32 %v1833, %v1831
      %v1835 = vmul.f32 %v1833, %v1832
      %v1836 = vmul.f32 %v1752, %v1834
      %v1837 = vmul.f32 %v1754, %v1835
      %v1838 = vmul.f32 %v1756, %v1834
      %v1839 = vmul.f32 %v1758, %v1835
      %v1840 = vmul.f32 %v1762, %v1834
      %v1841 = vmul.f32 %v1764, %v1835
      %v1842 = vmul.f32 %v1766, %v1834
      %v1843 = vmul.f32 %v1768, %v1835
      %v1844 = vmul.f32 %v1772, %v1834
      %v1845 = vmul.f32 %v1774, %v1835
      %v1846 = vmul.f32 %v1776, %v1834
      %v1847 = vmul.f32 %v1778, %v1835
      %v1848 = vmul.f32 %v1782, %v1834
      %v1849 = vmul.f32 %v1784, %v1835
      %v1850 = vmul.f32 %v1786, %v1834
      %v1851 = vmul.f32 %v1788, %v1835
      %v1852 = vmul.f32 %v1792, %v1834
      %v1853 = vmul.f32 %v1794, %v1835
      %v1854 = vmul.f32 %v1796, %v1834
      %v1855 = vmul.f32 %v1798, %v1835
      %v1856 = vmul.f32 %v1802, %v1834
      %v1857 = vmul.f32 %v1804, %v1835
      %v1858 = vmul.f32 %v1806, %v1834
      %v1859 = vmul.f32 %v1808, %v1835
      %v1860 = vmul.f32 %v1812, %v1834
      %v1861 = vmul.f32 %v1814, %v1835
      %v1862 = vmul.f32 %v1816, %v1834
      %v1863 = vmul.f32 %v1818, %v1835
      %v1864 = vmul.f32 %v1822, %v1834
      %v1865 = vmul.f32 %v1824, %v1835
      %v1866 = vmul.f32 %v1826, %v1834
      %v1867 = vmul.f32 %v1828, %v1835
      %v1868 = vadd.f32 %v1836, %v850
      %v1869 = vadd.f32 %v1837, %v851
      %v1870 = vadd.f32 %v1838, %v852
      %v1871 = vadd.f32 %v1839, %v853
      %v1872 = vadd.f32 %v1840, %v854
      %v1873 = vadd.f32 %v1841, %v855
      %v1874 = vadd.f32 %v1842, %v856
      %v1875 = vadd.f32 %v1843, %v857
      %v1876 = vadd.f32 %v1844, %v858
      %v1877 = vadd.f32 %v1845, %v859
      %v1878 = vadd.f32 %v1846, %v860
      %v1879 = vadd.f32 %v1847, %v861
      %v1880 = vadd.f32 %v1848, %v862
      %v1881 = vadd.f32 %v1849, %v863
      %v1882 = vadd.f32 %v1850, %v864
      %v1883 = vadd.f32 %v1851, %v865
      %v1884 = vadd.f32 %v1852, %v866
      %v1885 = vadd.f32 %v1853, %v867
      %v1886 = vadd.f32 %v1854, %v868
      %v1887 = vadd.f32 %v1855, %v869
      %v1888 = vadd.f32 %v1856, %v870
      %v1889 = vadd.f32 %v1857, %v871
      %v1890 = vadd.f32 %v1858, %v872
      %v1891 = vadd.f32 %v1859, %v873
      %v1892 = vadd.f32 %v1860, %v874
      %v1893 = vadd.f32 %v1861, %v875
      %v1894 = vadd.f32 %v1862, %v876
      %v1895 = vadd.f32 %v1863, %v877
      %v1896 = vadd.f32 %v1864, %v878
      %v1897 = vadd.f32 %v1865, %v879
      %v1898 = vadd.f32 %v1866, %v880
      %v1899 = vadd.f32 %v1867, %v881
      %1900 = vst [vmem:[%s328] sm:$0xff] %v1868
      %1901 = vst [vmem:[%s328 + $0x8] sm:$0xff] %v1869
      %1902 = vst [vmem:[%s328 + $0x10] sm:$0xff] %v1870
      %1903 = vst [vmem:[%s328 + $0x18] sm:$0xff] %v1871
      %1904 = vst [vmem:[%s328 + $0x20] sm:$0xff] %v1872
      %1905 = vst [vmem:[%s328 + $0x28] sm:$0xff] %v1873
      %1906 = vst [vmem:[%s328 + $0x30] sm:$0xff] %v1874
      %1907 = vst [vmem:[%s328 + $0x38] sm:$0xff] %v1875
      %1908 = vst [vmem:[%s328 + $0x40] sm:$0xff] %v1876
      %1909 = vst [vmem:[%s328 + $0x48] sm:$0xff] %v1877
      %1910 = vst [vmem:[%s328 + $0x50] sm:$0xff] %v1878
      %1911 = vst [vmem:[%s328 + $0x58] sm:$0xff] %v1879
      %1912 = vst [vmem:[%s328 + $0x60] sm:$0xff] %v1880
      %1913 = vst [vmem:[%s328 + $0x68] sm:$0xff] %v1881
      %1914 = vst [vmem:[%s328 + $0x70] sm:$0xff] %v1882
      %1915 = vst [vmem:[%s328 + $0x78] sm:$0xff] %v1883
      %1916 = vst [vmem:[%s328 + $0x80] sm:$0xff] %v1884
      %1917 = vst [vmem:[%s328 + $0x88] sm:$0xff] %v1885
      %1918 = vst [vmem:[%s328 + $0x90] sm:$0xff] %v1886
      %1919 = vst [vmem:[%s328 + $0x98] sm:$0xff] %v1887
      %1920 = vst [vmem:[%s328 + $0xa0] sm:$0xff] %v1888
      %1921 = vst [vmem:[%s328 + $0xa8] sm:$0xff] %v1889
      %1922 = vst [vmem:[%s328 + $0xb0] sm:$0xff] %v1890
      %1923 = vst [vmem:[%s328 + $0xb8] sm:$0xff] %v1891
      %1924 = vst [vmem:[%s328 + $0xc0] sm:$0xff] %v1892
      %1925 = vst [vmem:[%s328 + $0xc8] sm:$0xff] %v1893
      %1926 = vst [vmem:[%s328 + $0xd0] sm:$0xff] %v1894
      %1927 = vst [vmem:[%s328 + $0xd8] sm:$0xff] %v1895
      %1928 = vst [vmem:[%s328 + $0xe0] sm:$0xff] %v1896
      %1929 = vst [vmem:[%s328 + $0xe8] sm:$0xff] %v1897
      %1930 = vst [vmem:[%s328 + $0xf0] sm:$0xff] %v1898
      %1931 = vst [vmem:[%s328 + $0xf8] sm:$0xff] %v1899
      %s1932 = smul.u32 2, %s25
      %p1933 = scmp.lt.s32.totalorder %s24, 1
      %s1934 = scalar_select %p1933, %s24, 1
      %p1935 = scmp.lt.s32.totalorder %s1932, 1
      %s1936 = scalar_select %p1935, %s1932, 1
      %s1937 = smul.addr %s1934, 32
      %s1938 = sadd.s32 %s1936, %s1937
      %s1939 = smul.addr %s1938, 8
      %s1940 = scalar_lea.vmem %s8, %s1939
      // Predicated region
      $region57: #{self_attention.1} parent=51 // pred_check
        %p1941 = pneg %p225
      $region58: #{self_attention.1} parent=51 // pred_check_branch
        %1943 = sbr.rel (%p1941) target = $region60
      $region59: #{self_attention.1} parent=51 // pred_region
        %s1944 = smul.u32 2, %s25
      $region60: #{self_attention.1} parent=51 // pred_fallthru
        _
    $region52: #{self_attention.1} parent=5 // pred_fallthru
      _
    %p1945 = scmp.le.s32.totalorder 2, %s15
    // Predicated region
    $region61: #{self_attention.1} parent=5 // pred_check
      %p1946 = pneg %p1945
    $region62: #{self_attention.1} parent=5 // pred_check_branch
      %1948 = sbr.rel (%p1946) target = $region64
    $region63: #{self_attention.1} parent=5 // pred_region
      %s1949 = ssub.s32 %s15, 2
      // Predicated region
      $region65: #{self_attention.1} parent=63 // pred_check
        %p1950 = pneg %p231
      $region66: #{self_attention.1} parent=63 // pred_check_branch
        %1952 = sbr.rel (%p1950) target = $region68
      $region67: #{self_attention.1} parent=63 // pred_region
        %s1953 = smul.u32 2, %s27
        %p1954 = scmp.lt.s32.totalorder %s26, 1
        %s1955 = scalar_select %p1954, %s26, 1
        %p1956 = scmp.lt.s32.totalorder %s1953, 1
        %s1957 = scalar_select %p1956, %s1953, 1
        %s1958 = smul.addr %s1955, 32
        %s1959 = sadd.s32 %s1957, %s1958
        %s1960 = smul.addr %s1959, 8
        %s1961 = scalar_lea.vmem %s8, %s1960
      $region68: #{self_attention.1} parent=63 // pred_fallthru
        _
    $region64: #{self_attention.1} parent=5 // pred_fallthru
      _
  $region6: #{self_attention.1} parent=0 // loop_footer
    %s19 = sadd.s32 1, %s15
  $region7: #{self_attention.1} parent=0 // loop_footer_branch
    %14 = sbr.rel target = $region3
  $region8: #{self_attention.1} parent=0 // loop_exit
    _

</llo_original>
